<compile_context>
chip_gen: v7x
topology: tpu7x:2x2x1
jax: 0.10.0
libtpu: 0.0.40
codegen_flags: <defaults>
</compile_context>

<pallas_src>
import jax
import jax.numpy as jnp
from jax import lax
from jax.experimental import pallas as pl
from jax.experimental.pallas import tpu as pltpu

LANE = 128


def _round_up(x, m):
    return ((x + m - 1) // m) * m


def _full_spec(shape):
    nd = len(shape)
    return pl.BlockSpec(shape, lambda *args, _nd=nd: (0,) * _nd)


def _pick_vmem_limit(per_step_bytes):
    """Generation-aware VMEM budget: floor 32MiB, cap at 3/4 of physical."""
    cap = 128 * 1024 * 1024
    try:
        cap = int(pltpu.get_tpu_info().vmem_capacity_bytes)
    except Exception:
        pass  # e.g. interpret mode on a non-TPU backend
    want = max(2 * int(per_step_bytes), 32 * 1024 * 1024)
    # TODO(synk): if a single image block ever outgrows this (huge H*W*Cin),
    # add a spatial row-band grid axis with a 1-row halo instead.
    return int(min(want, (cap * 3) // 4))


# ---------------------------------------------------------------------------
# Kernel A: conv3x3 (+ adapter), Scaler folded in, per-image BN partial stats.
# ---------------------------------------------------------------------------
def _make_conv_kernel(use_adapter, h, w, cin, c_blk):
    def kernel(xp_ref, w_ref, b_ref, *refs):
        if use_adapter:
            dw_ref, db_ref, act_ref, sum_ref, sq_ref = refs
        else:
            act_ref, sum_ref, sq_ref = refs

        x0 = xp_ref[0]                                     # (h+2, w+2, cin) f32

        # im2col built in registers: 9 shifted taps concatenated on the lane
        # axis -> (h*w, 9*cin).  No VMEM scratch, no lane-sparse slab stores.
        taps = []
        for dy in range(3):
            for dx in range(3):
                taps.append(x0[dy:dy + h, dx:dx + w, :].reshape(h * w, cin))
        patch = jnp.concatenate(taps, axis=-1).astype(jnp.bfloat16)

        # Single bf16 MXU matmul over K = 9*cin.  When the adapter is on,
        # w_ref is [conv | up] (each padded to a multiple of 128 columns) so
        # one matmul produces both; slices below land on aligned lane blocks.
        y = jnp.dot(patch, w_ref[...],
                    preferred_element_type=jnp.float32) + b_ref[...]

        if use_adapter:
            up = y[:, c_blk:]                              # aligned lane slice
            y = (y[:, :c_blk]
                 + jnp.dot(up.astype(jnp.bfloat16), dw_ref[...],
                           preferred_element_type=jnp.float32)
                 + db_ref[...])

        # (Scaler 1/rate already folded into the packed weights/biases.)

        # Per-image BatchNorm partial statistics (f32, from the un-quantized y).
        sum_ref[...] = jnp.sum(y, axis=0, keepdims=True).reshape(1, 1, c_blk)
        sq_ref[...] = jnp.sum(y * y, axis=0, keepdims=True).reshape(1, 1, c_blk)

        # Lane-dense bf16 activation slab (last dim = c_blk, multiple of 128).
        act_ref[...] = y.reshape(1, h * w, c_blk).astype(jnp.bfloat16)

    return kernel


# ---------------------------------------------------------------------------
# Kernel B: BN finalize + ReLU + fused 2x2 max-pool (contiguous loads only).
# ---------------------------------------------------------------------------
def _make_bn_pool_kernel(h, w, c_blk, eps, inv_count):
    def kernel(act_ref, sum_ref, sq_ref, g_ref, b_ref, o_ref):
        # Reduce per-image partial sums and finalize one-pass batch stats.
        mean = jnp.sum(sum_ref[...], axis=0) * inv_count        # (1, c_blk)
        ex2 = jnp.sum(sq_ref[...], axis=0) * inv_count
        var = jnp.maximum(ex2 - mean * mean, 0.0)
        scale = g_ref[...] * lax.rsqrt(var + eps)               # (1, c_blk)
        shift = b_ref[...] - mean * scale

        a = act_ref[0].astype(jnp.float32)                      # (h*w, c_blk)
        r = jnp.maximum(a * scale + shift, 0.0)                 # BN + ReLU

        # 2x2 max-pool via leading-dim reshapes on one contiguous plane
        # (no strided ref indexing).
        r = jnp.max(r.reshape(h * w // 2, 2, c_blk), axis=1)    # pool over W
        r = jnp.max(r.reshape(h // 2, 2, w // 2, c_blk), axis=1)  # pool over H
        o_ref[...] = r.reshape(1, (h // 2) * (w // 2), c_blk)

    return kernel


# ---------------------------------------------------------------------------
# Wrapper
# ---------------------------------------------------------------------------
def layer_forward(x, params, *, using_adapter=False, rate=1.0, eps=1e-5):
    """x: [N, H, W, Cin] float32 (NHWC). Returns [N, H//2, W//2, Cout]."""
    n, h, w, cin = x.shape
    assert h % 2 == 0 and w % 2 == 0
    conv_w = params["conv_w"]                     # (Cout, Cin, 3, 3)  OIHW
    cout = conv_w.shape[0]
    rank = params["up_w"].shape[0]
    inv_rate = 1.0 / float(rate)

    c_blk = _round_up(cout, LANE)                 # lane-dense channel block
    r_blk = _round_up(rank, LANE)
    k = 9 * cin
    hw, hw4 = h * w, (h // 2) * (w // 2)

    def _pad_cols(a, to):
        return jnp.pad(a, ((0, 0), (0, to - a.shape[1])))

    # Pack 3x3 weights for a single K=9*Cin matmul; (dy, dx, cin) ordering
    # matches the in-kernel patch packing.  Scaler folded in; bf16 operands
    # for the bf16-native MXU; output columns padded to multiples of 128.
    cw = _pad_cols(jnp.transpose(conv_w, (2, 3, 1, 0)).reshape(k, cout) * inv_rate, c_blk)
    cb = _pad_cols((params["conv_b"] * inv_rate).reshape(1, cout), c_blk)

    if using_adapter:
        uw = _pad_cols(jnp.transpose(params["up_w"], (2, 3, 1, 0)).reshape(k, rank), r_blk)
        ub = _pad_cols(params["up_b"].reshape(1, rank), r_blk)
        wcat = jnp.concatenate([cw, uw], axis=1).astype(jnp.bfloat16)   # (k, c_blk+r_blk)
        bcat = jnp.concatenate([cb, ub], axis=1)
        dw = params["down_w"][:, :, 0, 0].T * inv_rate                  # (rank, cout)
        dw = jnp.pad(dw, ((0, r_blk - rank), (0, c_blk - cout))).astype(jnp.bfloat16)
        db = _pad_cols((params["down_b"] * inv_rate).reshape(1, cout), c_blk)
        extra_args = (dw, db)
        extra_specs = [_full_spec(dw.shape), _full_spec(db.shape)]
    else:
        wcat, bcat = cw.astype(jnp.bfloat16), cb
        extra_args, extra_specs = (), []

    # Zero-pad for the 3x3 'same' conv.
    # TODO(synk): this costs one extra HBM pass over x; could be folded into
    # the kernel by masking the border taps.
    xp = jnp.pad(x, ((0, 0), (1, 1), (1, 1), (0, 0)))

    c_tot = c_blk + (r_blk if using_adapter else 0)
    vmem_a = (2 * (h + 2) * (w + 2) * cin * 4      # double-buffered input block
              + 2 * hw * c_blk * 2                 # double-buffered act block
              + 2 * k * c_tot * 2 + 8 * c_tot * 4  # weights / biases / stats
              + 6 * hw * c_tot * 4)                # compute headroom (patch, y)
    vmem_b = 2 * hw * c_blk * 2 + 2 * hw4 * c_blk * 4 + 4 * hw * c_blk * 4
    vmem_limit = _pick_vmem_limit(max(vmem_a, vmem_b))

    # --- Kernel A: conv/adapter + per-image BN partial stats ----------------
    act, ssum, ssq = pl.pallas_call(
        _make_conv_kernel(bool(using_adapter), h, w, cin, c_blk),
        grid=(n,),
        in_specs=[pl.BlockSpec((1, h + 2, w + 2, cin), lambda i: (i, 0, 0, 0)),
                  _full_spec(wcat.shape), _full_spec(bcat.shape),
                  *extra_specs],
        out_specs=[pl.BlockSpec((1, hw, c_blk), lambda i: (i, 0, 0)),
                   pl.BlockSpec((1, 1, c_blk), lambda i: (i, 0, 0)),
                   pl.BlockSpec((1, 1, c_blk), lambda i: (i, 0, 0))],
        out_shape=[jax.ShapeDtypeStruct((n, hw, c_blk), jnp.bfloat16),
                   jax.ShapeDtypeStruct((n, 1, c_blk), jnp.float32),
                   jax.ShapeDtypeStruct((n, 1, c_blk), jnp.float32)],
        compiler_params=pltpu.CompilerParams(
            dimension_semantics=("parallel",),      # per-image, megacore-shardable
            vmem_limit_bytes=vmem_limit),
    )(xp, wcat, bcat, *extra_args)

    # --- Kernel B: BN apply + ReLU + 2x2 max-pool ---------------------------
    g = _pad_cols(params["gamma"].reshape(1, cout), c_blk)
    b = _pad_cols(params["beta"].reshape(1, cout), c_blk)
    inv_count = 1.0 / float(n * h * w)

    pooled = pl.pallas_call(
        _make_bn_pool_kernel(h, w, c_blk, eps, inv_count),
        grid=(n,),
        in_specs=[pl.BlockSpec((1, hw, c_blk), lambda i: (i, 0, 0)),
                  _full_spec(ssum.shape), _full_spec(ssq.shape),
                  _full_spec(g.shape), _full_spec(b.shape)],
        out_specs=pl.BlockSpec((1, hw4, c_blk), lambda i: (i, 0, 0)),
        out_shape=jax.ShapeDtypeStruct((n, hw4, c_blk), jnp.float32),
        compiler_params=pltpu.CompilerParams(
            dimension_semantics=("parallel",),
            vmem_limit_bytes=vmem_limit),
    )(act, ssum, ssq, g, b)

    # Strip channel padding; the reshape is row-major compatible (free).
    return pooled[:, :, :cout].reshape(n, h // 2, w // 2, cout)


# ---------------------------------------------------------------------------
# Pure-JAX reference (for correctness check)
# ---------------------------------------------------------------------------
def ref_forward(x, params, using_adapter, rate=1.0, eps=1e-5):
    dn = ("NHWC", "HWIO", "NHWC")
    prec = lax.Precision.HIGHEST
    cw = jnp.transpose(params["conv_w"], (2, 3, 1, 0))
    y = lax.conv_general_dilated(x, cw, (1, 1), "SAME", dimension_numbers=dn,
                                 precision=prec) + params["conv_b"]
    if using_adapter:
        uw = jnp.transpose(params["up_w"], (2, 3, 1, 0))
        u = lax.conv_general_dilated(x, uw, (1, 1), "SAME", dimension_numbers=dn,
                                     precision=prec) + params["up_b"]
        dw = jnp.transpose(params["down_w"], (2, 3, 1, 0))
        d = lax.conv_general_dilated(u, dw, (1, 1), "VALID", dimension_numbers=dn,
                                     precision=prec) + params["down_b"]
        y = y + d
    y = y / rate
    mean = y.mean(axis=(0, 1, 2))
    var = ((y - mean) ** 2).mean(axis=(0, 1, 2))
    y = (y - mean) * lax.rsqrt(var + eps) * params["gamma"] + params["beta"]
    y = jnp.maximum(y, 0.0)
    n, h, w, c = y.shape
    return y.reshape(n, h // 2, 2, w // 2, 2, c).max(axis=(2, 4))


if __name__ == "__main__":
    N, Cin, Cout, H, W, RANK = 2, 4, 8, 16, 16, 2

    key = jax.random.PRNGKey(0)
    ks = jax.random.split(key, 7)
    x = jax.random.normal(ks[0], (N, H, W, Cin), jnp.float32)   # NHWC

    params = {
        # PyTorch-style OIHW conv weights, deterministic synthetic init
        "conv_w": 0.3 * jax.random.normal(ks[1], (Cout, Cin, 3, 3), jnp.float32),
        "conv_b": 0.1 * jax.random.normal(ks[2], (Cout,), jnp.float32),
        "up_w":   0.3 * jax.random.normal(ks[3], (RANK, Cin, 3, 3), jnp.float32),
        "up_b":   0.1 * jax.random.normal(ks[4], (RANK,), jnp.float32),
        "down_w": 0.3 * jax.random.normal(ks[5], (Cout, RANK, 1, 1), jnp.float32),
        "down_b": 0.1 * jax.random.normal(ks[6], (Cout,), jnp.float32),
        "gamma":  jnp.ones((Cout,), jnp.float32),   # BN weight init
        "beta":   jnp.zeros((Cout,), jnp.float32),  # BN bias init
    }

    # bf16 MXU operands + bf16 activation slab -> compare against the f32
    # reference with a bf16-appropriate tolerance (output is BN-normalized).
    for use_adapter, rate in ((False, 1.0), (True, 1.0), (True, 0.5)):
        out = layer_forward(x, params, using_adapter=use_adapter, rate=rate)
        out = jax.block_until_ready(out)
        assert out.shape == (N, H // 2, W // 2, Cout), out.shape
        ref = ref_forward(x, params, use_adapter, rate=rate)
        err = float(jnp.max(jnp.abs(out - ref)))
        assert jnp.allclose(out, ref, atol=5e-2, rtol=5e-2), (
            f"mismatch (using_adapter={use_adapter}, rate={rate}): "
            f"max abs err {err}")

    print("KERNEL_OK")
</pallas_src>

<mosaic_0001>
module attributes {stable_mosaic.version = 11 : i64} {
  func.func @kernel(%arg0: i32, %arg1: memref<1x18x18x4xf32, #tpu.memory_space<vmem>>, %arg2: memref<36x128xbf16, #tpu.memory_space<vmem>>, %arg3: memref<1x128xf32, #tpu.memory_space<vmem>>, %arg4: memref<1x256x128xbf16, #tpu.memory_space<vmem>>, %arg5: memref<1x1x128xf32, #tpu.memory_space<vmem>>, %arg6: memref<1x1x128xf32, #tpu.memory_space<vmem>>) attributes {dimension_semantics = [#tpu.dimension_semantics<parallel>], iteration_bounds = array<i64: 2>, scalar_prefetch = 0 : i64, scratch_operands = 0 : i64, tpu.core_type = #tpu.core_type<tc>, window_params = [{transform_indices = @transform_0, window_bounds = array<i64: 1, 18, 18, 4>}, {pipeline_mode = #tpu.pipeline_mode<synchronous>, transform_indices = @transform_1, window_bounds = array<i64: 36, 128>}, {pipeline_mode = #tpu.pipeline_mode<synchronous>, transform_indices = @transform_2, window_bounds = array<i64: 1, 128>}, {transform_indices = @transform_3, window_bounds = array<i64: 1, 256, 128>}, {transform_indices = @transform_4, window_bounds = array<i64: 1, 1, 128>}, {transform_indices = @transform_5, window_bounds = array<i64: 1, 1, 128>}]} {
    %c0 = arith.constant 0 : index
    %c0_0 = arith.constant 0 : index
    %c0_1 = arith.constant 0 : index
    %c0_2 = arith.constant 0 : index
    %0 = vector.load %arg1[%c0, %c0_0, %c0_1, %c0_2] : memref<1x18x18x4xf32, #tpu.memory_space<vmem>>, vector<1x18x18x4xf32>
    %1 = vector.shape_cast %0 : vector<1x18x18x4xf32> to vector<18x18x4xf32>
    %2 = vector.extract_strided_slice %1 {offsets = [0, 0, 0], sizes = [16, 16, 4], strides = [1, 1, 1]} : vector<18x18x4xf32> to vector<16x16x4xf32>
    %3 = vector.shape_cast %2 : vector<16x16x4xf32> to vector<256x4xf32>
    %4 = vector.extract_strided_slice %1 {offsets = [0, 1, 0], sizes = [16, 16, 4], strides = [1, 1, 1]} : vector<18x18x4xf32> to vector<16x16x4xf32>
    %5 = vector.shape_cast %4 : vector<16x16x4xf32> to vector<256x4xf32>
    %6 = vector.extract_strided_slice %1 {offsets = [0, 2, 0], sizes = [16, 16, 4], strides = [1, 1, 1]} : vector<18x18x4xf32> to vector<16x16x4xf32>
    %7 = vector.shape_cast %6 : vector<16x16x4xf32> to vector<256x4xf32>
    %8 = vector.extract_strided_slice %1 {offsets = [1, 0, 0], sizes = [16, 16, 4], strides = [1, 1, 1]} : vector<18x18x4xf32> to vector<16x16x4xf32>
    %9 = vector.shape_cast %8 : vector<16x16x4xf32> to vector<256x4xf32>
    %10 = vector.extract_strided_slice %1 {offsets = [1, 1, 0], sizes = [16, 16, 4], strides = [1, 1, 1]} : vector<18x18x4xf32> to vector<16x16x4xf32>
    %11 = vector.shape_cast %10 : vector<16x16x4xf32> to vector<256x4xf32>
    %12 = vector.extract_strided_slice %1 {offsets = [1, 2, 0], sizes = [16, 16, 4], strides = [1, 1, 1]} : vector<18x18x4xf32> to vector<16x16x4xf32>
    %13 = vector.shape_cast %12 : vector<16x16x4xf32> to vector<256x4xf32>
    %14 = vector.extract_strided_slice %1 {offsets = [2, 0, 0], sizes = [16, 16, 4], strides = [1, 1, 1]} : vector<18x18x4xf32> to vector<16x16x4xf32>
    %15 = vector.shape_cast %14 : vector<16x16x4xf32> to vector<256x4xf32>
    %16 = vector.extract_strided_slice %1 {offsets = [2, 1, 0], sizes = [16, 16, 4], strides = [1, 1, 1]} : vector<18x18x4xf32> to vector<16x16x4xf32>
    %17 = vector.shape_cast %16 : vector<16x16x4xf32> to vector<256x4xf32>
    %18 = vector.extract_strided_slice %1 {offsets = [2, 2, 0], sizes = [16, 16, 4], strides = [1, 1, 1]} : vector<18x18x4xf32> to vector<16x16x4xf32>
    %19 = vector.shape_cast %18 : vector<16x16x4xf32> to vector<256x4xf32>
    %20 = tpu.concatenate %3, %5, %7, %9, %11, %13, %15, %17, %19 in 1 : vector<256x4xf32>, vector<256x4xf32>, vector<256x4xf32>, vector<256x4xf32>, vector<256x4xf32>, vector<256x4xf32>, vector<256x4xf32>, vector<256x4xf32>, vector<256x4xf32> -> vector<256x36xf32>
    %21 = arith.truncf %20 : vector<256x36xf32> to vector<256x36xbf16>
    %c0_3 = arith.constant 0 : index
    %c0_4 = arith.constant 0 : index
    %22 = vector.load %arg2[%c0_3, %c0_4] : memref<36x128xbf16, #tpu.memory_space<vmem>>, vector<36x128xbf16>
    %cst = arith.constant dense<0.000000e+00> : vector<256x128xf32>
    %23 = tpu.matmul %21, %22, %cst {dimension_numbers = #tpu.dot_dimension_numbers<[1], [0], [0], [1], [0, 0, 1, 1], [], []>} : vector<256x36xbf16>, vector<36x128xbf16>, vector<256x128xf32> -> vector<256x128xf32>
    %c0_5 = arith.constant 0 : index
    %c0_6 = arith.constant 0 : index
    %24 = vector.load %arg3[%c0_5, %c0_6] : memref<1x128xf32, #tpu.memory_space<vmem>>, vector<1x128xf32>
    %25 = vector.broadcast %24 : vector<1x128xf32> to vector<256x128xf32>
    %26 = arith.addf %23, %25 : vector<256x128xf32>
    %cst_7 = arith.constant dense<0.000000e+00> : vector<128xf32>
    %27 = vector.multi_reduction <add>, %26, %cst_7 [0] : vector<256x128xf32> to vector<128xf32>
    %28 = vector.shape_cast %27 : vector<128xf32> to vector<1x128xf32>
    %29 = vector.shape_cast %28 : vector<1x128xf32> to vector<1x1x128xf32>
    %c0_8 = arith.constant 0 : index
    %c0_9 = arith.constant 0 : index
    %c0_10 = arith.constant 0 : index
    %30 = vector.load %arg5[%c0_8, %c0_9, %c0_10] : memref<1x1x128xf32, #tpu.memory_space<vmem>>, vector<1x1x128xf32>
    tpu.vector_store %arg5[%c0_8, %c0_9, %c0_10], %29 {strides = array<i32>} : memref<1x1x128xf32, #tpu.memory_space<vmem>>, vector<1x1x128xf32>,
    %31 = arith.mulf %26, %26 : vector<256x128xf32>
    %cst_11 = arith.constant dense<0.000000e+00> : vector<128xf32>
    %32 = vector.multi_reduction <add>, %31, %cst_11 [0] : vector<256x128xf32> to vector<128xf32>
    %33 = vector.shape_cast %32 : vector<128xf32> to vector<1x128xf32>
    %34 = vector.shape_cast %33 : vector<1x128xf32> to vector<1x1x128xf32>
    %c0_12 = arith.constant 0 : index
    %c0_13 = arith.constant 0 : index
    %c0_14 = arith.constant 0 : index
    %35 = vector.load %arg6[%c0_12, %c0_13, %c0_14] : memref<1x1x128xf32, #tpu.memory_space<vmem>>, vector<1x1x128xf32>
    tpu.vector_store %arg6[%c0_12, %c0_13, %c0_14], %34 {strides = array<i32>} : memref<1x1x128xf32, #tpu.memory_space<vmem>>, vector<1x1x128xf32>,
    %36 = vector.shape_cast %26 : vector<256x128xf32> to vector<1x256x128xf32>
    %37 = arith.truncf %36 : vector<1x256x128xf32> to vector<1x256x128xbf16>
    %c0_15 = arith.constant 0 : index
    %c0_16 = arith.constant 0 : index
    %c0_17 = arith.constant 0 : index
    %38 = vector.load %arg4[%c0_15, %c0_16, %c0_17] : memref<1x256x128xbf16, #tpu.memory_space<vmem>>, vector<1x256x128xbf16>
    tpu.vector_store %arg4[%c0_15, %c0_16, %c0_17], %37 {strides = array<i32>} : memref<1x256x128xbf16, #tpu.memory_space<vmem>>, vector<1x256x128xbf16>,
    return
  }
  func.func @transform_0(%arg0: i32) -> (i32, i32, i32, i32) {
    %c0_i32 = arith.constant 0 : i32
    %c0_i32_0 = arith.constant 0 : i32
    %c0_i32_1 = arith.constant 0 : i32
    %c0_i32_2 = arith.constant 0 : i32
    return %arg0, %c0_i32, %c0_i32_0, %c0_i32_1 : i32, i32, i32, i32
  }
  func.func @transform_1(%arg0: i32) -> (i32, i32) {
    %c0_i32 = arith.constant 0 : i32
    %c0_i32_0 = arith.constant 0 : i32
    %c0_i32_1 = arith.constant 0 : i32
    return %c0_i32, %c0_i32_0 : i32, i32
  }
  func.func @transform_2(%arg0: i32) -> (i32, i32) {
    %c0_i32 = arith.constant 0 : i32
    %c0_i32_0 = arith.constant 0 : i32
    %c0_i32_1 = arith.constant 0 : i32
    return %c0_i32, %c0_i32_0 : i32, i32
  }
  func.func @transform_3(%arg0: i32) -> (i32, i32, i32) {
    %c0_i32 = arith.constant 0 : i32
    %c0_i32_0 = arith.constant 0 : i32
    %c0_i32_1 = arith.constant 0 : i32
    return %arg0, %c0_i32, %c0_i32_0 : i32, i32, i32
  }
  func.func @transform_4(%arg0: i32) -> (i32, i32, i32) {
    %c0_i32 = arith.constant 0 : i32
    %c0_i32_0 = arith.constant 0 : i32
    %c0_i32_1 = arith.constant 0 : i32
    return %arg0, %c0_i32, %c0_i32_0 : i32, i32, i32
  }
  func.func @transform_5(%arg0: i32) -> (i32, i32, i32) {
    %c0_i32 = arith.constant 0 : i32
    %c0_i32_0 = arith.constant 0 : i32
    %c0_i32_1 = arith.constant 0 : i32
    return %arg0, %c0_i32, %c0_i32_0 : i32, i32, i32
  }
}

</mosaic_0001>

<llo_original>
// kernel: tpu_custom_call.1
$region0: #{tpu_custom_call.1}
  #allocation0 [shape = 'u32[]', space=smem, size = 0x4, offset = 0x4, fixed_abs, tag = 'smem constant byte address 0x4 - core index']
  #allocation1 [shape = 'u32[144,128]{1,0:T(1,128)}', space=vmem, size = 0x12000, scoped, tag = 'internal scratch']
  %s0 = inlined_call_operand.vmem [shape: f32[2,18,18,4], index: 0, kind: input, shape index: {}]
  %s1 = inlined_call_operand.vmem [shape: bf16[36,128], index: 1, kind: input, shape index: {}]
  %s2 = inlined_call_operand.vmem [shape: f32[1,128], index: 2, kind: input, shape index: {}]
  %s3 = inlined_call_operand.hbm [shape: bf16[2,256,128], index: 3, kind: output, shape index: {0}]
  %s4 = inlined_call_operand.hbm [shape: f32[2,1,128], index: 4, kind: output, shape index: {1}]
  %s5 = inlined_call_operand.hbm [shape: f32[2,1,128], index: 5, kind: output, shape index: {2}]
  %6 = xla_tuple %s3, %s4, %s5
  %s7 = sld [smem:[#allocation0]]
  $region61: #{tpu_custom_call.1} parent=0
    _
  %s9 = ssub.s32 1, %s7
  %s10 = scalar_select 0, %s9, %s7
  $region1: #{tpu_custom_call.1} parent=0
    #allocation2 [shape = 'u8[131072]{0}', space=vmem, size = 0x20000, scoped, tag = 'output window, operand 0']
    #allocation3 [shape = 's32[2]{0}', space=sflag, size = 0x8, scoped, tag = 'scoped memory for tpu_custom_call.1']
    #allocation4 [shape = 'u8[1024]{0}', space=vmem, size = 0x400, scoped, tag = 'output window, operand 1']
    #allocation5 [shape = 's32[2]{0}', space=sflag, size = 0x8, scoped, tag = 'scoped memory for tpu_custom_call.1']
    #allocation6 [shape = 'u8[1024]{0}', space=vmem, size = 0x400, scoped, tag = 'output window, operand 2']
    %11 = vsyncpa [#allocation3], 0
    %s12 = scalar_lea.sflag [#allocation3], 1
    %13 = vsyncpa %s12, 0
    %14 = vsyncpa [#allocation5], 0
    %s15 = scalar_lea.sflag [#allocation5], 1
    %16 = vsyncpa %s15, 0
    loop: start=0, step=1, limit=4
    $region2: #{tpu_custom_call.1} parent=1 // loop_pre_header
      _
    $region3: #{tpu_custom_call.1} parent=1 // loop_header
      %s18 = sphi 0, %s22
      %p19 = scmp.ge.s32.totalorder %s18, 4
      %s28 = sphi 0, %s30
      %s31 = sphi 0, %s28
      %s32 = sphi 0, %s31
      %s48 = sphi 0, %s32
      %s52 = sphi 0, %s52
      %s54 = sphi 0, %s52
      %s55 = sphi 0, %s54
      %s69 = sphi 0, %s55
      %s73 = sphi 0, %s73
      %s75 = sphi 0, %s73
      %s76 = sphi 0, %s75
      %s90 = sphi 0, %s76
      %s96 = sphi 0, %s98
      %s99 = sphi 0, %s96
      %s100 = sphi 0, %s99
      %s116 = sphi 0, %s100
      %s122 = sphi 0, %s124
      %s125 = sphi 0, %s122
      %s126 = sphi 0, %s125
      %s142 = sphi 0, %s126
      %s148 = sphi 0, %s150
      %s151 = sphi 0, %s148
      %s152 = sphi 0, %s151
      %s168 = sphi 0, %s152
    $region4: #{tpu_custom_call.1} parent=1 // loop_header_branch
      %21 = sbr.rel (%p19) target = $region8
    $region5: #{tpu_custom_call.1} parent=1 // loop_body
      %s23 = ssub.s32 %s18, 1
      %s24 = ssub.s32 %s18, 2
      %s25 = sadd.s32 %s18, 1
      %s26 = ssub.s32 %s18, %s25
      %p27 = scmp.eq.s32.totalorder %s26, 0
      %s29 = sadd.s32 %s28, 1
      %s30 = scalar_select %p27, %s28, %s29
      %p33 = pneg %p27
      %p34 = scmp.eq.s32.totalorder %s18, 1
      %p35 = por %p33, %p34
      %p36 = scmp.ne.s32.totalorder %s28, %s31
      %p37 = scmp.eq.s32.totalorder %s18, 0
      %p38 = por %p36, %p37
      %p39 = scmp.ne.s32.totalorder %s28, %s31
      %p40 = scmp.eq.s32.totalorder %s23, 1
      %p41 = por %p39, %p40
      %p42 = scmp.ne.s32.totalorder %s31, %s32
      %p43 = scmp.eq.s32.totalorder %s23, 0
      %p44 = por %p42, %p43
      %p45 = scmp.ne.s32.totalorder %s31, %s32
      %p46 = scmp.eq.s32.totalorder %s24, 1
      %p47 = por %p45, %p46
      %p49 = scmp.ne.s32.totalorder %s32, %s48
      %p50 = scmp.eq.s32.totalorder %s24, 0
      %p51 = por %p49, %p50
      %s53 = sadd.s32 %s52, 1
      %p56 = scmp.eq.s32.totalorder %s18, 1
      %p57 = scmp.ne.s32.totalorder %s52, %s54
      %p58 = scmp.eq.s32.totalorder %s18, 0
      %p59 = por %p57, %p58
      %p60 = scmp.ne.s32.totalorder %s52, %s54
      %p61 = scmp.eq.s32.totalorder %s23, 1
      %p62 = por %p60, %p61
      %p63 = scmp.ne.s32.totalorder %s54, %s55
      %p64 = scmp.eq.s32.totalorder %s23, 0
      %p65 = por %p63, %p64
      %p66 = scmp.ne.s32.totalorder %s54, %s55
      %p67 = scmp.eq.s32.totalorder %s24, 1
      %p68 = por %p66, %p67
      %p70 = scmp.ne.s32.totalorder %s55, %s69
      %p71 = scmp.eq.s32.totalorder %s24, 0
      %p72 = por %p70, %p71
      %s74 = sadd.s32 %s73, 1
      %p77 = scmp.eq.s32.totalorder %s18, 1
      %p78 = scmp.ne.s32.totalorder %s73, %s75
      %p79 = scmp.eq.s32.totalorder %s18, 0
      %p80 = por %p78, %p79
      %p81 = scmp.ne.s32.totalorder %s73, %s75
      %p82 = scmp.eq.s32.totalorder %s23, 1
      %p83 = por %p81, %p82
      %p84 = scmp.ne.s32.totalorder %s75, %s76
      %p85 = scmp.eq.s32.totalorder %s23, 0
      %p86 = por %p84, %p85
      %p87 = scmp.ne.s32.totalorder %s75, %s76
      %p88 = scmp.eq.s32.totalorder %s24, 1
      %p89 = por %p87, %p88
      %p91 = scmp.ne.s32.totalorder %s76, %s90
      %p92 = scmp.eq.s32.totalorder %s24, 0
      %p93 = por %p91, %p92
      %s94 = ssub.s32 %s18, %s25
      %p95 = scmp.eq.s32.totalorder %s94, 0
      %s97 = sadd.s32 %s96, 1
      %s98 = scalar_select %p95, %s96, %s97
      %p101 = pneg %p95
      %p102 = scmp.eq.s32.totalorder %s18, 1
      %p103 = por %p101, %p102
      %p104 = scmp.ne.s32.totalorder %s96, %s99
      %p105 = scmp.eq.s32.totalorder %s18, 0
      %p106 = por %p104, %p105
      %p107 = scmp.ne.s32.totalorder %s96, %s99
      %p108 = scmp.eq.s32.totalorder %s23, 1
      %p109 = por %p107, %p108
      %p110 = scmp.ne.s32.totalorder %s99, %s100
      %p111 = scmp.eq.s32.totalorder %s23, 0
      %p112 = por %p110, %p111
      %p113 = scmp.ne.s32.totalorder %s99, %s100
      %p114 = scmp.eq.s32.totalorder %s24, 1
      %p115 = por %p113, %p114
      %p117 = scmp.ne.s32.totalorder %s100, %s116
      %p118 = scmp.eq.s32.totalorder %s24, 0
      %p119 = por %p117, %p118
      %s120 = ssub.s32 %s18, %s25
      %p121 = scmp.eq.s32.totalorder %s120, 0
      %s123 = sadd.s32 %s122, 1
      %s124 = scalar_select %p121, %s122, %s123
      %p127 = pneg %p121
      %p128 = scmp.eq.s32.totalorder %s18, 1
      %p129 = por %p127, %p128
      %p130 = scmp.ne.s32.totalorder %s122, %s125
      %p131 = scmp.eq.s32.totalorder %s18, 0
      %p132 = por %p130, %p131
      %p133 = scmp.ne.s32.totalorder %s122, %s125
      %p134 = scmp.eq.s32.totalorder %s23, 1
      %p135 = por %p133, %p134
      %p136 = scmp.ne.s32.totalorder %s125, %s126
      %p137 = scmp.eq.s32.totalorder %s23, 0
      %p138 = por %p136, %p137
      %p139 = scmp.ne.s32.totalorder %s125, %s126
      %p140 = scmp.eq.s32.totalorder %s24, 1
      %p141 = por %p139, %p140
      %p143 = scmp.ne.s32.totalorder %s126, %s142
      %p144 = scmp.eq.s32.totalorder %s24, 0
      %p145 = por %p143, %p144
      %s146 = ssub.s32 %s18, %s25
      %p147 = scmp.eq.s32.totalorder %s146, 0
      %s149 = sadd.s32 %s148, 1
      %s150 = scalar_select %p147, %s148, %s149
      %p153 = pneg %p147
      %p154 = scmp.eq.s32.totalorder %s18, 1
      %p155 = por %p153, %p154
      %p156 = scmp.ne.s32.totalorder %s148, %s151
      %p157 = scmp.eq.s32.totalorder %s18, 0
      %p158 = por %p156, %p157
      %p159 = scmp.ne.s32.totalorder %s148, %s151
      %p160 = scmp.eq.s32.totalorder %s23, 1
      %p161 = por %p159, %p160
      %p162 = scmp.ne.s32.totalorder %s151, %s152
      %p163 = scmp.eq.s32.totalorder %s23, 0
      %p164 = por %p162, %p163
      %p165 = scmp.ne.s32.totalorder %s151, %s152
      %p166 = scmp.eq.s32.totalorder %s24, 1
      %p167 = por %p165, %p166
      %p169 = scmp.ne.s32.totalorder %s152, %s168
      %p170 = scmp.eq.s32.totalorder %s24, 0
      %p171 = por %p169, %p170
      %p172 = scmp.le.s32.totalorder 1, %s18
      %p173 = scmp.lt.s32.totalorder %s18, 3
      %p174 = pnand %p172, %p173
      %p175 = pneg %p174
      // Predicated region
      $region9: #{tpu_custom_call.1} parent=5 // pred_check
        _
      $region10: #{tpu_custom_call.1} parent=5 // pred_check_branch
        %177 = sbr.rel (%p174) target = $region12
      $region11: #{tpu_custom_call.1} parent=5 // pred_region
        %s178 = ssub.s32 %s18, 1
        // Predicated region
        $region13: #{tpu_custom_call.1} parent=11 // pred_check
          %p179 = pneg %p65
        $region14: #{tpu_custom_call.1} parent=11 // pred_check_branch
          %181 = sbr.rel (%p179) target = $region16
        $region15: #{tpu_custom_call.1} parent=11 // pred_region
          _
        $region16: #{tpu_custom_call.1} parent=11 // pred_fallthru
          _
        // Predicated region
        $region17: #{tpu_custom_call.1} parent=11 // pred_check
          %p182 = pneg %p86
        $region18: #{tpu_custom_call.1} parent=11 // pred_check_branch
          %184 = sbr.rel (%p182) target = $region20
        $region19: #{tpu_custom_call.1} parent=11 // pred_region
          _
        $region20: #{tpu_custom_call.1} parent=11 // pred_fallthru
          _
      $region12: #{tpu_custom_call.1} parent=5 // pred_fallthru
        _
      %p185 = scmp.lt.s32.totalorder %s18, 2
      // Predicated region
      $region21: #{tpu_custom_call.1} parent=5 // pred_check
        %p186 = pneg %p185
      $region22: #{tpu_custom_call.1} parent=5 // pred_check_branch
        %188 = sbr.rel (%p186) target = $region24
      $region23: #{tpu_custom_call.1} parent=5 // pred_region
        // Predicated region
        $region25: #{tpu_custom_call.1} parent=23 // pred_check
          %p189 = pneg %p38
        $region26: #{tpu_custom_call.1} parent=23 // pred_check_branch
          %191 = sbr.rel (%p189) target = $region28
        $region27: #{tpu_custom_call.1} parent=23 // pred_region
          %p192 = scmp.lt.s32.totalorder %s18, 1
          %s193 = scalar_select %p192, %s18, 1
          %s194 = smul.addr %s193, 54
          %s195 = smul.addr %s194, 8
          %s196 = scalar_lea.vmem %s0, %s195
        $region28: #{tpu_custom_call.1} parent=23 // pred_fallthru
          _
      $region24: #{tpu_custom_call.1} parent=5 // pred_fallthru
        _
      %p197 = scmp.le.s32.totalorder 1, %s18
      %p198 = scmp.lt.s32.totalorder %s18, 3
      %p199 = pnand %p197, %p198
      %p200 = pneg %p199
      // Predicated region
      $region29: #{tpu_custom_call.1} parent=5 // pred_check
        _
      $region30: #{tpu_custom_call.1} parent=5 // pred_check_branch
        %202 = sbr.rel (%p199) target = $region32
      $region31: #{tpu_custom_call.1} parent=5 // pred_region
        %s203 = ssub.s32 %s18, 1
        %p204 = scmp.lt.s32.totalorder %s23, 1
        %s205 = scalar_select %p204, %s23, 1
        %s206 = smul.addr %s205, 54
        %s207 = smul.addr %s206, 8
        %s208 = scalar_lea.vmem %s0, %s207
        %p209 = pneg %p44
        %p210 = pneg %p41
        %p211 = pneg %p65
        %p212 = pneg %p62
        %p213 = pneg %p86
        %p214 = pneg %p83
        %p215 = pneg %p112
        %p216 = pneg %p109
        %s217 = sand.u32 %s99, 1
        %s218 = scalar_lea.sflag [#allocation3], %s217
        %s219 = sand.u32 %s99, 1
        %s220 = smul.addr %s219, 128
        %s221 = scalar_lea.vmem [#allocation2], %s220
        %p222 = pneg %p138
        %p223 = pneg %p135
        %s224 = sand.u32 %s23, 1
        %s225 = scalar_lea.sflag [#allocation5], %s224
        %s226 = sand.u32 %s125, 1
        %s227 = scalar_lea.vmem [#allocation4], %s226
        %p228 = pneg %p164
        %p229 = pneg %p161
        %s230 = sand.u32 %s23, 1
        %s231 = scalar_lea.sflag [#allocation5], %s230
        %s232 = sand.u32 %s151, 1
        %s233 = scalar_lea.vmem [#allocation6], %s232
        %p234 = scmp.lt.s32.totalorder %s23, 1
        %s235 = scalar_select %p234, %s23, 1
        %s236 = smul.addr %s235, 54
        %s237 = smul.addr %s236, 8
        %s238 = scalar_lea.vmem %s0, %s237
        %v240 = vld [vmem:[%s238] sm:$0xff]
        %v241 = vld [vmem:[%s238 + $0x8] sm:$0xff]
        %v242 = vld [vmem:[%s238 + $0x10] sm:$0x3]
        %v243 = vld [vmem:[%s238 + $0x18] sm:$0xff]
        %v244 = vld [vmem:[%s238 + $0x20] sm:$0xff]
        %v245 = vld [vmem:[%s238 + $0x28] sm:$0x3]
        %v246 = vld [vmem:[%s238 + $0x30] sm:$0xff]
        %v247 = vld [vmem:[%s238 + $0x38] sm:$0xff]
        %v248 = vld [vmem:[%s238 + $0x40] sm:$0x3]
        %v249 = vld [vmem:[%s238 + $0x48] sm:$0xff]
        %v250 = vld [vmem:[%s238 + $0x50] sm:$0xff]
        %v251 = vld [vmem:[%s238 + $0x58] sm:$0x3]
        %v252 = vld [vmem:[%s238 + $0x60] sm:$0xff]
        %v253 = vld [vmem:[%s238 + $0x68] sm:$0xff]
        %v254 = vld [vmem:[%s238 + $0x70] sm:$0x3]
        %v255 = vld [vmem:[%s238 + $0x78] sm:$0xff]
        %v256 = vld [vmem:[%s238 + $0x80] sm:$0xff]
        %v257 = vld [vmem:[%s238 + $0x88] sm:$0x3]
        %v258 = vld [vmem:[%s238 + $0x90] sm:$0xff]
        %v259 = vld [vmem:[%s238 + $0x98] sm:$0xff]
        %v260 = vld [vmem:[%s238 + $0xa0] sm:$0x3]
        %v261 = vld [vmem:[%s238 + $0xa8] sm:$0xff]
        %v262 = vld [vmem:[%s238 + $0xb0] sm:$0xff]
        %v263 = vld [vmem:[%s238 + $0xb8] sm:$0x3]
        %v264 = vld [vmem:[%s238 + $0xc0] sm:$0xff]
        %v265 = vld [vmem:[%s238 + $0xc8] sm:$0xff]
        %v266 = vld [vmem:[%s238 + $0xd0] sm:$0x3]
        %v267 = vld [vmem:[%s238 + $0xd8] sm:$0xff]
        %v268 = vld [vmem:[%s238 + $0xe0] sm:$0xff]
        %v269 = vld [vmem:[%s238 + $0xe8] sm:$0x3]
        %v270 = vld [vmem:[%s238 + $0xf0] sm:$0xff]
        %v271 = vld [vmem:[%s238 + $0xf8] sm:$0xff]
        %v272 = vld [vmem:[%s238 + $0x100] sm:$0x3]
        %v273 = vld [vmem:[%s238 + $0x108] sm:$0xff]
        %v274 = vld [vmem:[%s238 + $0x110] sm:$0xff]
        %v275 = vld [vmem:[%s238 + $0x118] sm:$0x3]
        %v276 = vld [vmem:[%s238 + $0x120] sm:$0xff]
        %v277 = vld [vmem:[%s238 + $0x128] sm:$0xff]
        %v278 = vld [vmem:[%s238 + $0x130] sm:$0x3]
        %v279 = vld [vmem:[%s238 + $0x138] sm:$0xff]
        %v280 = vld [vmem:[%s238 + $0x140] sm:$0xff]
        %v281 = vld [vmem:[%s238 + $0x148] sm:$0x3]
        %v282 = vld [vmem:[%s238 + $0x150] sm:$0xff]
        %v283 = vld [vmem:[%s238 + $0x158] sm:$0xff]
        %v284 = vld [vmem:[%s238 + $0x160] sm:$0x3]
        %v285 = vld [vmem:[%s238 + $0x168] sm:$0xff]
        %v286 = vld [vmem:[%s238 + $0x170] sm:$0xff]
        %v287 = vld [vmem:[%s238 + $0x178] sm:$0x3]
        %v288 = vld [vmem:[%s238 + $0x180] sm:$0xff]
        %v289 = vld [vmem:[%s238 + $0x188] sm:$0xff]
        %v290 = vld [vmem:[%s238 + $0x190] sm:$0x3]
        %v291 = vld [vmem:[%s238 + $0x198] sm:$0xff]
        %v292 = vld [vmem:[%s238 + $0x1a0] sm:$0xff]
        %v293 = vld [vmem:[%s238 + $0x1a8] sm:$0x3]
        %vm342 = vcmask 1046528
        %v343 = vrot.slane %v240, 1
        %v344 = vrot.slane %v241, 1
        %v345 = vsel %vm342, %v343, %v344
        %v346 = vrot.slane %v242, 1
        %v347 = vsel %vm342, %v344, %v346
        %v348 = vrot.slane %v243, 1
        %v349 = vrot.slane %v244, 1
        %v350 = vsel %vm342, %v348, %v349
        %v351 = vrot.slane %v245, 1
        %v352 = vsel %vm342, %v349, %v351
        %v353 = vrot.slane %v246, 1
        %v354 = vrot.slane %v247, 1
        %v355 = vsel %vm342, %v353, %v354
        %v356 = vrot.slane %v248, 1
        %v357 = vsel %vm342, %v354, %v356
        %v358 = vrot.slane %v249, 1
        %v359 = vrot.slane %v250, 1
        %v360 = vsel %vm342, %v358, %v359
        %v361 = vrot.slane %v251, 1
        %v362 = vsel %vm342, %v359, %v361
        %v363 = vrot.slane %v252, 1
        %v364 = vrot.slane %v253, 1
        %v365 = vsel %vm342, %v363, %v364
        %v366 = vrot.slane %v254, 1
        %v367 = vsel %vm342, %v364, %v366
        %v368 = vrot.slane %v255, 1
        %v369 = vrot.slane %v256, 1
        %v370 = vsel %vm342, %v368, %v369
        %v371 = vrot.slane %v257, 1
        %v372 = vsel %vm342, %v369, %v371
        %v373 = vrot.slane %v258, 1
        %v374 = vrot.slane %v259, 1
        %v375 = vsel %vm342, %v373, %v374
        %v376 = vrot.slane %v260, 1
        %v377 = vsel %vm342, %v374, %v376
        %v378 = vrot.slane %v261, 1
        %v379 = vrot.slane %v262, 1
        %v380 = vsel %vm342, %v378, %v379
        %v381 = vrot.slane %v263, 1
        %v382 = vsel %vm342, %v379, %v381
        %v383 = vrot.slane %v264, 1
        %v384 = vrot.slane %v265, 1
        %v385 = vsel %vm342, %v383, %v384
        %v386 = vrot.slane %v266, 1
        %v387 = vsel %vm342, %v384, %v386
        %v388 = vrot.slane %v267, 1
        %v389 = vrot.slane %v268, 1
        %v390 = vsel %vm342, %v388, %v389
        %v391 = vrot.slane %v269, 1
        %v392 = vsel %vm342, %v389, %v391
        %v393 = vrot.slane %v270, 1
        %v394 = vrot.slane %v271, 1
        %v395 = vsel %vm342, %v393, %v394
        %v396 = vrot.slane %v272, 1
        %v397 = vsel %vm342, %v394, %v396
        %v398 = vrot.slane %v273, 1
        %v399 = vrot.slane %v274, 1
        %v400 = vsel %vm342, %v398, %v399
        %v401 = vrot.slane %v275, 1
        %v402 = vsel %vm342, %v399, %v401
        %v403 = vrot.slane %v276, 1
        %v404 = vrot.slane %v277, 1
        %v405 = vsel %vm342, %v403, %v404
        %v406 = vrot.slane %v278, 1
        %v407 = vsel %vm342, %v404, %v406
        %v408 = vrot.slane %v279, 1
        %v409 = vrot.slane %v280, 1
        %v410 = vsel %vm342, %v408, %v409
        %v411 = vrot.slane %v281, 1
        %v412 = vsel %vm342, %v409, %v411
        %v413 = vrot.slane %v282, 1
        %v414 = vrot.slane %v283, 1
        %v415 = vsel %vm342, %v413, %v414
        %v416 = vrot.slane %v284, 1
        %v417 = vsel %vm342, %v414, %v416
        %v418 = vrot.slane %v285, 1
        %v419 = vrot.slane %v286, 1
        %v420 = vsel %vm342, %v418, %v419
        %v421 = vrot.slane %v287, 1
        %v422 = vsel %vm342, %v419, %v421
        %vm423 = vcmask 1045504
        %v424 = vrot.slane %v240, 2
        %v425 = vrot.slane %v241, 2
        %v426 = vsel %vm423, %v424, %v425
        %v427 = vrot.slane %v242, 2
        %v428 = vsel %vm423, %v425, %v427
        %v429 = vrot.slane %v243, 2
        %v430 = vrot.slane %v244, 2
        %v431 = vsel %vm423, %v429, %v430
        %v432 = vrot.slane %v245, 2
        %v433 = vsel %vm423, %v430, %v432
        %v434 = vrot.slane %v246, 2
        %v435 = vrot.slane %v247, 2
        %v436 = vsel %vm423, %v434, %v435
        %v437 = vrot.slane %v248, 2
        %v438 = vsel %vm423, %v435, %v437
        %v439 = vrot.slane %v249, 2
        %v440 = vrot.slane %v250, 2
        %v441 = vsel %vm423, %v439, %v440
        %v442 = vrot.slane %v251, 2
        %v443 = vsel %vm423, %v440, %v442
        %v444 = vrot.slane %v252, 2
        %v445 = vrot.slane %v253, 2
        %v446 = vsel %vm423, %v444, %v445
        %v447 = vrot.slane %v254, 2
        %v448 = vsel %vm423, %v445, %v447
        %v449 = vrot.slane %v255, 2
        %v450 = vrot.slane %v256, 2
        %v451 = vsel %vm423, %v449, %v450
        %v452 = vrot.slane %v257, 2
        %v453 = vsel %vm423, %v450, %v452
        %v454 = vrot.slane %v258, 2
        %v455 = vrot.slane %v259, 2
        %v456 = vsel %vm423, %v454, %v455
        %v457 = vrot.slane %v260, 2
        %v458 = vsel %vm423, %v455, %v457
        %v459 = vrot.slane %v261, 2
        %v460 = vrot.slane %v262, 2
        %v461 = vsel %vm423, %v459, %v460
        %v462 = vrot.slane %v263, 2
        %v463 = vsel %vm423, %v460, %v462
        %v464 = vrot.slane %v264, 2
        %v465 = vrot.slane %v265, 2
        %v466 = vsel %vm423, %v464, %v465
        %v467 = vrot.slane %v266, 2
        %v468 = vsel %vm423, %v465, %v467
        %v469 = vrot.slane %v267, 2
        %v470 = vrot.slane %v268, 2
        %v471 = vsel %vm423, %v469, %v470
        %v472 = vrot.slane %v269, 2
        %v473 = vsel %vm423, %v470, %v472
        %v474 = vrot.slane %v270, 2
        %v475 = vrot.slane %v271, 2
        %v476 = vsel %vm423, %v474, %v475
        %v477 = vrot.slane %v272, 2
        %v478 = vsel %vm423, %v475, %v477
        %v479 = vrot.slane %v273, 2
        %v480 = vrot.slane %v274, 2
        %v481 = vsel %vm423, %v479, %v480
        %v482 = vrot.slane %v275, 2
        %v483 = vsel %vm423, %v480, %v482
        %v484 = vrot.slane %v276, 2
        %v485 = vrot.slane %v277, 2
        %v486 = vsel %vm423, %v484, %v485
        %v487 = vrot.slane %v278, 2
        %v488 = vsel %vm423, %v485, %v487
        %v489 = vrot.slane %v279, 2
        %v490 = vrot.slane %v280, 2
        %v491 = vsel %vm423, %v489, %v490
        %v492 = vrot.slane %v281, 2
        %v493 = vsel %vm423, %v490, %v492
        %v494 = vrot.slane %v282, 2
        %v495 = vrot.slane %v283, 2
        %v496 = vsel %vm423, %v494, %v495
        %v497 = vrot.slane %v284, 2
        %v498 = vsel %vm423, %v495, %v497
        %v499 = vrot.slane %v285, 2
        %v500 = vrot.slane %v286, 2
        %v501 = vsel %vm423, %v499, %v500
        %v502 = vrot.slane %v287, 2
        %v503 = vsel %vm423, %v500, %v502
        %v507 = vrot.slane %v288, 1
        %v508 = vrot.slane %v289, 1
        %v509 = vsel %vm342, %v507, %v508
        %v510 = vrot.slane %v290, 1
        %v511 = vsel %vm342, %v508, %v510
        %v512 = vrot.slane %v288, 2
        %v513 = vrot.slane %v289, 2
        %v514 = vsel %vm423, %v512, %v513
        %v515 = vrot.slane %v290, 2
        %v516 = vsel %vm423, %v513, %v515
        %v520 = vrot.slane %v291, 1
        %v521 = vrot.slane %v292, 1
        %v522 = vsel %vm342, %v520, %v521
        %v523 = vrot.slane %v293, 1
        %v524 = vsel %vm342, %v521, %v523
        %v525 = vrot.slane %v291, 2
        %v526 = vrot.slane %v292, 2
        %v527 = vsel %vm423, %v525, %v526
        %v528 = vrot.slane %v293, 2
        %v529 = vsel %vm423, %v526, %v528
        %530 = vrot.lane.b32.xlu0 %v345, 4
        %v531 = vpop.permute.xlu0 %530
        %532 = vrot.lane.b32.xlu0 %v347, 4
        %v533 = vpop.permute.xlu0 %532
        %534 = vrot.lane.b32.xlu0 %v350, 4
        %v535 = vpop.permute.xlu0 %534
        %536 = vrot.lane.b32.xlu0 %v352, 4
        %v537 = vpop.permute.xlu0 %536
        %538 = vrot.lane.b32.xlu0 %v355, 4
        %v539 = vpop.permute.xlu0 %538
        %540 = vrot.lane.b32.xlu0 %v357, 4
        %v541 = vpop.permute.xlu0 %540
        %542 = vrot.lane.b32.xlu0 %v360, 4
        %v543 = vpop.permute.xlu0 %542
        %544 = vrot.lane.b32.xlu0 %v362, 4
        %v545 = vpop.permute.xlu0 %544
        %546 = vrot.lane.b32.xlu0 %v365, 4
        %v547 = vpop.permute.xlu0 %546
        %548 = vrot.lane.b32.xlu0 %v367, 4
        %v549 = vpop.permute.xlu0 %548
        %550 = vrot.lane.b32.xlu0 %v370, 4
        %v551 = vpop.permute.xlu0 %550
        %552 = vrot.lane.b32.xlu0 %v372, 4
        %v553 = vpop.permute.xlu0 %552
        %554 = vrot.lane.b32.xlu0 %v375, 4
        %v555 = vpop.permute.xlu0 %554
        %556 = vrot.lane.b32.xlu0 %v377, 4
        %v557 = vpop.permute.xlu0 %556
        %558 = vrot.lane.b32.xlu0 %v380, 4
        %v559 = vpop.permute.xlu0 %558
        %560 = vrot.lane.b32.xlu0 %v382, 4
        %v561 = vpop.permute.xlu0 %560
        %562 = vrot.lane.b32.xlu0 %v385, 4
        %v563 = vpop.permute.xlu0 %562
        %564 = vrot.lane.b32.xlu0 %v387, 4
        %v565 = vpop.permute.xlu0 %564
        %566 = vrot.lane.b32.xlu0 %v390, 4
        %v567 = vpop.permute.xlu0 %566
        %568 = vrot.lane.b32.xlu0 %v392, 4
        %v569 = vpop.permute.xlu0 %568
        %570 = vrot.lane.b32.xlu0 %v395, 4
        %v571 = vpop.permute.xlu0 %570
        %572 = vrot.lane.b32.xlu0 %v397, 4
        %v573 = vpop.permute.xlu0 %572
        %574 = vrot.lane.b32.xlu0 %v400, 4
        %v575 = vpop.permute.xlu0 %574
        %576 = vrot.lane.b32.xlu0 %v402, 4
        %v577 = vpop.permute.xlu0 %576
        %578 = vrot.lane.b32.xlu0 %v405, 4
        %v579 = vpop.permute.xlu0 %578
        %580 = vrot.lane.b32.xlu0 %v407, 4
        %v581 = vpop.permute.xlu0 %580
        %582 = vrot.lane.b32.xlu0 %v410, 4
        %v583 = vpop.permute.xlu0 %582
        %584 = vrot.lane.b32.xlu0 %v412, 4
        %v585 = vpop.permute.xlu0 %584
        %586 = vrot.lane.b32.xlu0 %v415, 4
        %v587 = vpop.permute.xlu0 %586
        %588 = vrot.lane.b32.xlu0 %v417, 4
        %v589 = vpop.permute.xlu0 %588
        %590 = vrot.lane.b32.xlu0 %v420, 4
        %v591 = vpop.permute.xlu0 %590
        %592 = vrot.lane.b32.xlu0 %v422, 4
        %v593 = vpop.permute.xlu0 %592
        %626 = vrot.lane.b32.xlu0 %v426, 8
        %v627 = vpop.permute.xlu0 %626
        %628 = vrot.lane.b32.xlu0 %v428, 8
        %v629 = vpop.permute.xlu0 %628
        %630 = vrot.lane.b32.xlu0 %v431, 8
        %v631 = vpop.permute.xlu0 %630
        %632 = vrot.lane.b32.xlu0 %v433, 8
        %v633 = vpop.permute.xlu0 %632
        %634 = vrot.lane.b32.xlu0 %v436, 8
        %v635 = vpop.permute.xlu0 %634
        %636 = vrot.lane.b32.xlu0 %v438, 8
        %v637 = vpop.permute.xlu0 %636
        %638 = vrot.lane.b32.xlu0 %v441, 8
        %v639 = vpop.permute.xlu0 %638
        %640 = vrot.lane.b32.xlu0 %v443, 8
        %v641 = vpop.permute.xlu0 %640
        %642 = vrot.lane.b32.xlu0 %v446, 8
        %v643 = vpop.permute.xlu0 %642
        %644 = vrot.lane.b32.xlu0 %v448, 8
        %v645 = vpop.permute.xlu0 %644
        %646 = vrot.lane.b32.xlu0 %v451, 8
        %v647 = vpop.permute.xlu0 %646
        %648 = vrot.lane.b32.xlu0 %v453, 8
        %v649 = vpop.permute.xlu0 %648
        %650 = vrot.lane.b32.xlu0 %v456, 8
        %v651 = vpop.permute.xlu0 %650
        %652 = vrot.lane.b32.xlu0 %v458, 8
        %v653 = vpop.permute.xlu0 %652
        %654 = vrot.lane.b32.xlu0 %v461, 8
        %v655 = vpop.permute.xlu0 %654
        %656 = vrot.lane.b32.xlu0 %v463, 8
        %v657 = vpop.permute.xlu0 %656
        %658 = vrot.lane.b32.xlu0 %v466, 8
        %v659 = vpop.permute.xlu0 %658
        %660 = vrot.lane.b32.xlu0 %v468, 8
        %v661 = vpop.permute.xlu0 %660
        %662 = vrot.lane.b32.xlu0 %v471, 8
        %v663 = vpop.permute.xlu0 %662
        %664 = vrot.lane.b32.xlu0 %v473, 8
        %v665 = vpop.permute.xlu0 %664
        %666 = vrot.lane.b32.xlu0 %v476, 8
        %v667 = vpop.permute.xlu0 %666
        %668 = vrot.lane.b32.xlu0 %v478, 8
        %v669 = vpop.permute.xlu0 %668
        %670 = vrot.lane.b32.xlu0 %v481, 8
        %v671 = vpop.permute.xlu0 %670
        %672 = vrot.lane.b32.xlu0 %v483, 8
        %v673 = vpop.permute.xlu0 %672
        %674 = vrot.lane.b32.xlu0 %v486, 8
        %v675 = vpop.permute.xlu0 %674
        %676 = vrot.lane.b32.xlu0 %v488, 8
        %v677 = vpop.permute.xlu0 %676
        %678 = vrot.lane.b32.xlu0 %v491, 8
        %v679 = vpop.permute.xlu0 %678
        %680 = vrot.lane.b32.xlu0 %v493, 8
        %v681 = vpop.permute.xlu0 %680
        %682 = vrot.lane.b32.xlu0 %v496, 8
        %v683 = vpop.permute.xlu0 %682
        %684 = vrot.lane.b32.xlu0 %v498, 8
        %v685 = vpop.permute.xlu0 %684
        %686 = vrot.lane.b32.xlu0 %v501, 8
        %v687 = vpop.permute.xlu0 %686
        %688 = vrot.lane.b32.xlu0 %v503, 8
        %v689 = vpop.permute.xlu0 %688
        %722 = vrot.lane.b32.xlu0 %v243, 12
        %v723 = vpop.permute.xlu0 %722
        %724 = vrot.lane.b32.xlu0 %v244, 12
        %v725 = vpop.permute.xlu0 %724
        %726 = vrot.lane.b32.xlu0 %v246, 12
        %v727 = vpop.permute.xlu0 %726
        %728 = vrot.lane.b32.xlu0 %v247, 12
        %v729 = vpop.permute.xlu0 %728
        %730 = vrot.lane.b32.xlu0 %v249, 12
        %v731 = vpop.permute.xlu0 %730
        %732 = vrot.lane.b32.xlu0 %v250, 12
        %v733 = vpop.permute.xlu0 %732
        %734 = vrot.lane.b32.xlu0 %v252, 12
        %v735 = vpop.permute.xlu0 %734
        %736 = vrot.lane.b32.xlu0 %v253, 12
        %v737 = vpop.permute.xlu0 %736
        %738 = vrot.lane.b32.xlu0 %v255, 12
        %v739 = vpop.permute.xlu0 %738
        %740 = vrot.lane.b32.xlu0 %v256, 12
        %v741 = vpop.permute.xlu0 %740
        %742 = vrot.lane.b32.xlu0 %v258, 12
        %v743 = vpop.permute.xlu0 %742
        %744 = vrot.lane.b32.xlu0 %v259, 12
        %v745 = vpop.permute.xlu0 %744
        %746 = vrot.lane.b32.xlu0 %v261, 12
        %v747 = vpop.permute.xlu0 %746
        %748 = vrot.lane.b32.xlu0 %v262, 12
        %v749 = vpop.permute.xlu0 %748
        %750 = vrot.lane.b32.xlu0 %v264, 12
        %v751 = vpop.permute.xlu0 %750
        %752 = vrot.lane.b32.xlu0 %v265, 12
        %v753 = vpop.permute.xlu0 %752
        %754 = vrot.lane.b32.xlu0 %v267, 12
        %v755 = vpop.permute.xlu0 %754
        %756 = vrot.lane.b32.xlu0 %v268, 12
        %v757 = vpop.permute.xlu0 %756
        %758 = vrot.lane.b32.xlu0 %v270, 12
        %v759 = vpop.permute.xlu0 %758
        %760 = vrot.lane.b32.xlu0 %v271, 12
        %v761 = vpop.permute.xlu0 %760
        %762 = vrot.lane.b32.xlu0 %v273, 12
        %v763 = vpop.permute.xlu0 %762
        %764 = vrot.lane.b32.xlu0 %v274, 12
        %v765 = vpop.permute.xlu0 %764
        %766 = vrot.lane.b32.xlu0 %v276, 12
        %v767 = vpop.permute.xlu0 %766
        %768 = vrot.lane.b32.xlu0 %v277, 12
        %v769 = vpop.permute.xlu0 %768
        %770 = vrot.lane.b32.xlu0 %v279, 12
        %v771 = vpop.permute.xlu0 %770
        %772 = vrot.lane.b32.xlu0 %v280, 12
        %v773 = vpop.permute.xlu0 %772
        %774 = vrot.lane.b32.xlu0 %v282, 12
        %v775 = vpop.permute.xlu0 %774
        %776 = vrot.lane.b32.xlu0 %v283, 12
        %v777 = vpop.permute.xlu0 %776
        %778 = vrot.lane.b32.xlu0 %v285, 12
        %v779 = vpop.permute.xlu0 %778
        %780 = vrot.lane.b32.xlu0 %v286, 12
        %v781 = vpop.permute.xlu0 %780
        %782 = vrot.lane.b32.xlu0 %v288, 12
        %v783 = vpop.permute.xlu0 %782
        %784 = vrot.lane.b32.xlu0 %v289, 12
        %v785 = vpop.permute.xlu0 %784
        %818 = vrot.lane.b32.xlu0 %v350, 16
        %v819 = vpop.permute.xlu0 %818
        %820 = vrot.lane.b32.xlu0 %v352, 16
        %v821 = vpop.permute.xlu0 %820
        %822 = vrot.lane.b32.xlu0 %v355, 16
        %v823 = vpop.permute.xlu0 %822
        %824 = vrot.lane.b32.xlu0 %v357, 16
        %v825 = vpop.permute.xlu0 %824
        %826 = vrot.lane.b32.xlu0 %v360, 16
        %v827 = vpop.permute.xlu0 %826
        %828 = vrot.lane.b32.xlu0 %v362, 16
        %v829 = vpop.permute.xlu0 %828
        %830 = vrot.lane.b32.xlu0 %v365, 16
        %v831 = vpop.permute.xlu0 %830
        %832 = vrot.lane.b32.xlu0 %v367, 16
        %v833 = vpop.permute.xlu0 %832
        %834 = vrot.lane.b32.xlu0 %v370, 16
        %v835 = vpop.permute.xlu0 %834
        %836 = vrot.lane.b32.xlu0 %v372, 16
        %v837 = vpop.permute.xlu0 %836
        %838 = vrot.lane.b32.xlu0 %v375, 16
        %v839 = vpop.permute.xlu0 %838
        %840 = vrot.lane.b32.xlu0 %v377, 16
        %v841 = vpop.permute.xlu0 %840
        %842 = vrot.lane.b32.xlu0 %v380, 16
        %v843 = vpop.permute.xlu0 %842
        %844 = vrot.lane.b32.xlu0 %v382, 16
        %v845 = vpop.permute.xlu0 %844
        %846 = vrot.lane.b32.xlu0 %v385, 16
        %v847 = vpop.permute.xlu0 %846
        %848 = vrot.lane.b32.xlu0 %v387, 16
        %v849 = vpop.permute.xlu0 %848
        %850 = vrot.lane.b32.xlu0 %v390, 16
        %v851 = vpop.permute.xlu0 %850
        %852 = vrot.lane.b32.xlu0 %v392, 16
        %v853 = vpop.permute.xlu0 %852
        %854 = vrot.lane.b32.xlu0 %v395, 16
        %v855 = vpop.permute.xlu0 %854
        %856 = vrot.lane.b32.xlu0 %v397, 16
        %v857 = vpop.permute.xlu0 %856
        %858 = vrot.lane.b32.xlu0 %v400, 16
        %v859 = vpop.permute.xlu0 %858
        %860 = vrot.lane.b32.xlu0 %v402, 16
        %v861 = vpop.permute.xlu0 %860
        %862 = vrot.lane.b32.xlu0 %v405, 16
        %v863 = vpop.permute.xlu0 %862
        %864 = vrot.lane.b32.xlu0 %v407, 16
        %v865 = vpop.permute.xlu0 %864
        %866 = vrot.lane.b32.xlu0 %v410, 16
        %v867 = vpop.permute.xlu0 %866
        %868 = vrot.lane.b32.xlu0 %v412, 16
        %v869 = vpop.permute.xlu0 %868
        %870 = vrot.lane.b32.xlu0 %v415, 16
        %v871 = vpop.permute.xlu0 %870
        %872 = vrot.lane.b32.xlu0 %v417, 16
        %v873 = vpop.permute.xlu0 %872
        %874 = vrot.lane.b32.xlu0 %v420, 16
        %v875 = vpop.permute.xlu0 %874
        %876 = vrot.lane.b32.xlu0 %v422, 16
        %v877 = vpop.permute.xlu0 %876
        %878 = vrot.lane.b32.xlu0 %v509, 16
        %v879 = vpop.permute.xlu0 %878
        %880 = vrot.lane.b32.xlu0 %v511, 16
        %v881 = vpop.permute.xlu0 %880
        %914 = vrot.lane.b32.xlu0 %v431, 20
        %v915 = vpop.permute.xlu0 %914
        %916 = vrot.lane.b32.xlu0 %v433, 20
        %v917 = vpop.permute.xlu0 %916
        %918 = vrot.lane.b32.xlu0 %v436, 20
        %v919 = vpop.permute.xlu0 %918
        %920 = vrot.lane.b32.xlu0 %v438, 20
        %v921 = vpop.permute.xlu0 %920
        %922 = vrot.lane.b32.xlu0 %v441, 20
        %v923 = vpop.permute.xlu0 %922
        %924 = vrot.lane.b32.xlu0 %v443, 20
        %v925 = vpop.permute.xlu0 %924
        %926 = vrot.lane.b32.xlu0 %v446, 20
        %v927 = vpop.permute.xlu0 %926
        %928 = vrot.lane.b32.xlu0 %v448, 20
        %v929 = vpop.permute.xlu0 %928
        %930 = vrot.lane.b32.xlu0 %v451, 20
        %v931 = vpop.permute.xlu0 %930
        %932 = vrot.lane.b32.xlu0 %v453, 20
        %v933 = vpop.permute.xlu0 %932
        %934 = vrot.lane.b32.xlu0 %v456, 20
        %v935 = vpop.permute.xlu0 %934
        %936 = vrot.lane.b32.xlu0 %v458, 20
        %v937 = vpop.permute.xlu0 %936
        %938 = vrot.lane.b32.xlu0 %v461, 20
        %v939 = vpop.permute.xlu0 %938
        %940 = vrot.lane.b32.xlu0 %v463, 20
        %v941 = vpop.permute.xlu0 %940
        %942 = vrot.lane.b32.xlu0 %v466, 20
        %v943 = vpop.permute.xlu0 %942
        %944 = vrot.lane.b32.xlu0 %v468, 20
        %v945 = vpop.permute.xlu0 %944
        %946 = vrot.lane.b32.xlu0 %v471, 20
        %v947 = vpop.permute.xlu0 %946
        %948 = vrot.lane.b32.xlu0 %v473, 20
        %v949 = vpop.permute.xlu0 %948
        %950 = vrot.lane.b32.xlu0 %v476, 20
        %v951 = vpop.permute.xlu0 %950
        %952 = vrot.lane.b32.xlu0 %v478, 20
        %v953 = vpop.permute.xlu0 %952
        %954 = vrot.lane.b32.xlu0 %v481, 20
        %v955 = vpop.permute.xlu0 %954
        %956 = vrot.lane.b32.xlu0 %v483, 20
        %v957 = vpop.permute.xlu0 %956
        %958 = vrot.lane.b32.xlu0 %v486, 20
        %v959 = vpop.permute.xlu0 %958
        %960 = vrot.lane.b32.xlu0 %v488, 20
        %v961 = vpop.permute.xlu0 %960
        %962 = vrot.lane.b32.xlu0 %v491, 20
        %v963 = vpop.permute.xlu0 %962
        %964 = vrot.lane.b32.xlu0 %v493, 20
        %v965 = vpop.permute.xlu0 %964
        %966 = vrot.lane.b32.xlu0 %v496, 20
        %v967 = vpop.permute.xlu0 %966
        %968 = vrot.lane.b32.xlu0 %v498, 20
        %v969 = vpop.permute.xlu0 %968
        %970 = vrot.lane.b32.xlu0 %v501, 20
        %v971 = vpop.permute.xlu0 %970
        %972 = vrot.lane.b32.xlu0 %v503, 20
        %v973 = vpop.permute.xlu0 %972
        %974 = vrot.lane.b32.xlu0 %v514, 20
        %v975 = vpop.permute.xlu0 %974
        %976 = vrot.lane.b32.xlu0 %v516, 20
        %v977 = vpop.permute.xlu0 %976
        %1010 = vrot.lane.b32.xlu0 %v246, 24
        %v1011 = vpop.permute.xlu0 %1010
        %1012 = vrot.lane.b32.xlu0 %v247, 24
        %v1013 = vpop.permute.xlu0 %1012
        %1014 = vrot.lane.b32.xlu0 %v249, 24
        %v1015 = vpop.permute.xlu0 %1014
        %1016 = vrot.lane.b32.xlu0 %v250, 24
        %v1017 = vpop.permute.xlu0 %1016
        %1018 = vrot.lane.b32.xlu0 %v252, 24
        %v1019 = vpop.permute.xlu0 %1018
        %1020 = vrot.lane.b32.xlu0 %v253, 24
        %v1021 = vpop.permute.xlu0 %1020
        %1022 = vrot.lane.b32.xlu0 %v255, 24
        %v1023 = vpop.permute.xlu0 %1022
        %1024 = vrot.lane.b32.xlu0 %v256, 24
        %v1025 = vpop.permute.xlu0 %1024
        %1026 = vrot.lane.b32.xlu0 %v258, 24
        %v1027 = vpop.permute.xlu0 %1026
        %1028 = vrot.lane.b32.xlu0 %v259, 24
        %v1029 = vpop.permute.xlu0 %1028
        %1030 = vrot.lane.b32.xlu0 %v261, 24
        %v1031 = vpop.permute.xlu0 %1030
        %1032 = vrot.lane.b32.xlu0 %v262, 24
        %v1033 = vpop.permute.xlu0 %1032
        %1034 = vrot.lane.b32.xlu0 %v264, 24
        %v1035 = vpop.permute.xlu0 %1034
        %1036 = vrot.lane.b32.xlu0 %v265, 24
        %v1037 = vpop.permute.xlu0 %1036
        %1038 = vrot.lane.b32.xlu0 %v267, 24
        %v1039 = vpop.permute.xlu0 %1038
        %1040 = vrot.lane.b32.xlu0 %v268, 24
        %v1041 = vpop.permute.xlu0 %1040
        %1042 = vrot.lane.b32.xlu0 %v270, 24
        %v1043 = vpop.permute.xlu0 %1042
        %1044 = vrot.lane.b32.xlu0 %v271, 24
        %v1045 = vpop.permute.xlu0 %1044
        %1046 = vrot.lane.b32.xlu0 %v273, 24
        %v1047 = vpop.permute.xlu0 %1046
        %1048 = vrot.lane.b32.xlu0 %v274, 24
        %v1049 = vpop.permute.xlu0 %1048
        %1050 = vrot.lane.b32.xlu0 %v276, 24
        %v1051 = vpop.permute.xlu0 %1050
        %1052 = vrot.lane.b32.xlu0 %v277, 24
        %v1053 = vpop.permute.xlu0 %1052
        %1054 = vrot.lane.b32.xlu0 %v279, 24
        %v1055 = vpop.permute.xlu0 %1054
        %1056 = vrot.lane.b32.xlu0 %v280, 24
        %v1057 = vpop.permute.xlu0 %1056
        %1058 = vrot.lane.b32.xlu0 %v282, 24
        %v1059 = vpop.permute.xlu0 %1058
        %1060 = vrot.lane.b32.xlu0 %v283, 24
        %v1061 = vpop.permute.xlu0 %1060
        %1062 = vrot.lane.b32.xlu0 %v285, 24
        %v1063 = vpop.permute.xlu0 %1062
        %1064 = vrot.lane.b32.xlu0 %v286, 24
        %v1065 = vpop.permute.xlu0 %1064
        %1066 = vrot.lane.b32.xlu0 %v288, 24
        %v1067 = vpop.permute.xlu0 %1066
        %1068 = vrot.lane.b32.xlu0 %v289, 24
        %v1069 = vpop.permute.xlu0 %1068
        %1070 = vrot.lane.b32.xlu0 %v291, 24
        %v1071 = vpop.permute.xlu0 %1070
        %1072 = vrot.lane.b32.xlu0 %v292, 24
        %v1073 = vpop.permute.xlu0 %1072
        %1106 = vrot.lane.b32.xlu0 %v355, 28
        %v1107 = vpop.permute.xlu0 %1106
        %1108 = vrot.lane.b32.xlu0 %v357, 28
        %v1109 = vpop.permute.xlu0 %1108
        %1110 = vrot.lane.b32.xlu0 %v360, 28
        %v1111 = vpop.permute.xlu0 %1110
        %1112 = vrot.lane.b32.xlu0 %v362, 28
        %v1113 = vpop.permute.xlu0 %1112
        %1114 = vrot.lane.b32.xlu0 %v365, 28
        %v1115 = vpop.permute.xlu0 %1114
        %1116 = vrot.lane.b32.xlu0 %v367, 28
        %v1117 = vpop.permute.xlu0 %1116
        %1118 = vrot.lane.b32.xlu0 %v370, 28
        %v1119 = vpop.permute.xlu0 %1118
        %1120 = vrot.lane.b32.xlu0 %v372, 28
        %v1121 = vpop.permute.xlu0 %1120
        %1122 = vrot.lane.b32.xlu0 %v375, 28
        %v1123 = vpop.permute.xlu0 %1122
        %1124 = vrot.lane.b32.xlu0 %v377, 28
        %v1125 = vpop.permute.xlu0 %1124
        %1126 = vrot.lane.b32.xlu0 %v380, 28
        %v1127 = vpop.permute.xlu0 %1126
        %1128 = vrot.lane.b32.xlu0 %v382, 28
        %v1129 = vpop.permute.xlu0 %1128
        %1130 = vrot.lane.b32.xlu0 %v385, 28
        %v1131 = vpop.permute.xlu0 %1130
        %1132 = vrot.lane.b32.xlu0 %v387, 28
        %v1133 = vpop.permute.xlu0 %1132
        %1134 = vrot.lane.b32.xlu0 %v390, 28
        %v1135 = vpop.permute.xlu0 %1134
        %1136 = vrot.lane.b32.xlu0 %v392, 28
        %v1137 = vpop.permute.xlu0 %1136
        %1138 = vrot.lane.b32.xlu0 %v395, 28
        %v1139 = vpop.permute.xlu0 %1138
        %1140 = vrot.lane.b32.xlu0 %v397, 28
        %v1141 = vpop.permute.xlu0 %1140
        %1142 = vrot.lane.b32.xlu0 %v400, 28
        %v1143 = vpop.permute.xlu0 %1142
        %1144 = vrot.lane.b32.xlu0 %v402, 28
        %v1145 = vpop.permute.xlu0 %1144
        %1146 = vrot.lane.b32.xlu0 %v405, 28
        %v1147 = vpop.permute.xlu0 %1146
        %1148 = vrot.lane.b32.xlu0 %v407, 28
        %v1149 = vpop.permute.xlu0 %1148
        %1150 = vrot.lane.b32.xlu0 %v410, 28
        %v1151 = vpop.permute.xlu0 %1150
        %1152 = vrot.lane.b32.xlu0 %v412, 28
        %v1153 = vpop.permute.xlu0 %1152
        %1154 = vrot.lane.b32.xlu0 %v415, 28
        %v1155 = vpop.permute.xlu0 %1154
        %1156 = vrot.lane.b32.xlu0 %v417, 28
        %v1157 = vpop.permute.xlu0 %1156
        %1158 = vrot.lane.b32.xlu0 %v420, 28
        %v1159 = vpop.permute.xlu0 %1158
        %1160 = vrot.lane.b32.xlu0 %v422, 28
        %v1161 = vpop.permute.xlu0 %1160
        %1162 = vrot.lane.b32.xlu0 %v509, 28
        %v1163 = vpop.permute.xlu0 %1162
        %1164 = vrot.lane.b32.xlu0 %v511, 28
        %v1165 = vpop.permute.xlu0 %1164
        %1166 = vrot.lane.b32.xlu0 %v522, 28
        %v1167 = vpop.permute.xlu0 %1166
        %1168 = vrot.lane.b32.xlu0 %v524, 28
        %v1169 = vpop.permute.xlu0 %1168
        %1202 = vrot.lane.b32.xlu0 %v436, 32
        %v1203 = vpop.permute.xlu0 %1202
        %1204 = vrot.lane.b32.xlu0 %v438, 32
        %v1205 = vpop.permute.xlu0 %1204
        %1206 = vrot.lane.b32.xlu0 %v441, 32
        %v1207 = vpop.permute.xlu0 %1206
        %1208 = vrot.lane.b32.xlu0 %v443, 32
        %v1209 = vpop.permute.xlu0 %1208
        %1210 = vrot.lane.b32.xlu0 %v446, 32
        %v1211 = vpop.permute.xlu0 %1210
        %1212 = vrot.lane.b32.xlu0 %v448, 32
        %v1213 = vpop.permute.xlu0 %1212
        %1214 = vrot.lane.b32.xlu0 %v451, 32
        %v1215 = vpop.permute.xlu0 %1214
        %1216 = vrot.lane.b32.xlu0 %v453, 32
        %v1217 = vpop.permute.xlu0 %1216
        %1218 = vrot.lane.b32.xlu0 %v456, 32
        %v1219 = vpop.permute.xlu0 %1218
        %1220 = vrot.lane.b32.xlu0 %v458, 32
        %v1221 = vpop.permute.xlu0 %1220
        %1222 = vrot.lane.b32.xlu0 %v461, 32
        %v1223 = vpop.permute.xlu0 %1222
        %1224 = vrot.lane.b32.xlu0 %v463, 32
        %v1225 = vpop.permute.xlu0 %1224
        %1226 = vrot.lane.b32.xlu0 %v466, 32
        %v1227 = vpop.permute.xlu0 %1226
        %1228 = vrot.lane.b32.xlu0 %v468, 32
        %v1229 = vpop.permute.xlu0 %1228
        %1230 = vrot.lane.b32.xlu0 %v471, 32
        %v1231 = vpop.permute.xlu0 %1230
        %1232 = vrot.lane.b32.xlu0 %v473, 32
        %v1233 = vpop.permute.xlu0 %1232
        %1234 = vrot.lane.b32.xlu0 %v476, 32
        %v1235 = vpop.permute.xlu0 %1234
        %1236 = vrot.lane.b32.xlu0 %v478, 32
        %v1237 = vpop.permute.xlu0 %1236
        %1238 = vrot.lane.b32.xlu0 %v481, 32
        %v1239 = vpop.permute.xlu0 %1238
        %1240 = vrot.lane.b32.xlu0 %v483, 32
        %v1241 = vpop.permute.xlu0 %1240
        %1242 = vrot.lane.b32.xlu0 %v486, 32
        %v1243 = vpop.permute.xlu0 %1242
        %1244 = vrot.lane.b32.xlu0 %v488, 32
        %v1245 = vpop.permute.xlu0 %1244
        %1246 = vrot.lane.b32.xlu0 %v491, 32
        %v1247 = vpop.permute.xlu0 %1246
        %1248 = vrot.lane.b32.xlu0 %v493, 32
        %v1249 = vpop.permute.xlu0 %1248
        %1250 = vrot.lane.b32.xlu0 %v496, 32
        %v1251 = vpop.permute.xlu0 %1250
        %1252 = vrot.lane.b32.xlu0 %v498, 32
        %v1253 = vpop.permute.xlu0 %1252
        %1254 = vrot.lane.b32.xlu0 %v501, 32
        %v1255 = vpop.permute.xlu0 %1254
        %1256 = vrot.lane.b32.xlu0 %v503, 32
        %v1257 = vpop.permute.xlu0 %1256
        %1258 = vrot.lane.b32.xlu0 %v514, 32
        %v1259 = vpop.permute.xlu0 %1258
        %1260 = vrot.lane.b32.xlu0 %v516, 32
        %v1261 = vpop.permute.xlu0 %1260
        %1262 = vrot.lane.b32.xlu0 %v527, 32
        %v1263 = vpop.permute.xlu0 %1262
        %1264 = vrot.lane.b32.xlu0 %v529, 32
        %v1265 = vpop.permute.xlu0 %1264
        %vm1298 = vcmask 31744
        %v1299 = vsel %vm1298, %v240, %v531
        %v1300 = vsel %vm1298, %v241, %v533
        %v1301 = vsel %vm1298, %v243, %v535
        %v1302 = vsel %vm1298, %v244, %v537
        %v1303 = vsel %vm1298, %v246, %v539
        %v1304 = vsel %vm1298, %v247, %v541
        %v1305 = vsel %vm1298, %v249, %v543
        %v1306 = vsel %vm1298, %v250, %v545
        %v1307 = vsel %vm1298, %v252, %v547
        %v1308 = vsel %vm1298, %v253, %v549
        %v1309 = vsel %vm1298, %v255, %v551
        %v1310 = vsel %vm1298, %v256, %v553
        %v1311 = vsel %vm1298, %v258, %v555
        %v1312 = vsel %vm1298, %v259, %v557
        %v1313 = vsel %vm1298, %v261, %v559
        %v1314 = vsel %vm1298, %v262, %v561
        %v1315 = vsel %vm1298, %v264, %v563
        %v1316 = vsel %vm1298, %v265, %v565
        %v1317 = vsel %vm1298, %v267, %v567
        %v1318 = vsel %vm1298, %v268, %v569
        %v1319 = vsel %vm1298, %v270, %v571
        %v1320 = vsel %vm1298, %v271, %v573
        %v1321 = vsel %vm1298, %v273, %v575
        %v1322 = vsel %vm1298, %v274, %v577
        %v1323 = vsel %vm1298, %v276, %v579
        %v1324 = vsel %vm1298, %v277, %v581
        %v1325 = vsel %vm1298, %v279, %v583
        %v1326 = vsel %vm1298, %v280, %v585
        %v1327 = vsel %vm1298, %v282, %v587
        %v1328 = vsel %vm1298, %v283, %v589
        %v1329 = vsel %vm1298, %v285, %v591
        %v1330 = vsel %vm1298, %v286, %v593
        %vm1331 = vcmask 64512
        %v1332 = vsel %vm1331, %v1299, %v627
        %v1333 = vsel %vm1331, %v1300, %v629
        %v1334 = vsel %vm1331, %v1301, %v631
        %v1335 = vsel %vm1331, %v1302, %v633
        %v1336 = vsel %vm1331, %v1303, %v635
        %v1337 = vsel %vm1331, %v1304, %v637
        %v1338 = vsel %vm1331, %v1305, %v639
        %v1339 = vsel %vm1331, %v1306, %v641
        %v1340 = vsel %vm1331, %v1307, %v643
        %v1341 = vsel %vm1331, %v1308, %v645
        %v1342 = vsel %vm1331, %v1309, %v647
        %v1343 = vsel %vm1331, %v1310, %v649
        %v1344 = vsel %vm1331, %v1311, %v651
        %v1345 = vsel %vm1331, %v1312, %v653
        %v1346 = vsel %vm1331, %v1313, %v655
        %v1347 = vsel %vm1331, %v1314, %v657
        %v1348 = vsel %vm1331, %v1315, %v659
        %v1349 = vsel %vm1331, %v1316, %v661
        %v1350 = vsel %vm1331, %v1317, %v663
        %v1351 = vsel %vm1331, %v1318, %v665
        %v1352 = vsel %vm1331, %v1319, %v667
        %v1353 = vsel %vm1331, %v1320, %v669
        %v1354 = vsel %vm1331, %v1321, %v671
        %v1355 = vsel %vm1331, %v1322, %v673
        %v1356 = vsel %vm1331, %v1323, %v675
        %v1357 = vsel %vm1331, %v1324, %v677
        %v1358 = vsel %vm1331, %v1325, %v679
        %v1359 = vsel %vm1331, %v1326, %v681
        %v1360 = vsel %vm1331, %v1327, %v683
        %v1361 = vsel %vm1331, %v1328, %v685
        %v1362 = vsel %vm1331, %v1329, %v687
        %v1363 = vsel %vm1331, %v1330, %v689
        %vm1364 = vcmask 97280
        %v1365 = vsel %vm1364, %v1332, %v723
        %v1366 = vsel %vm1364, %v1333, %v725
        %v1367 = vsel %vm1364, %v1334, %v727
        %v1368 = vsel %vm1364, %v1335, %v729
        %v1369 = vsel %vm1364, %v1336, %v731
        %v1370 = vsel %vm1364, %v1337, %v733
        %v1371 = vsel %vm1364, %v1338, %v735
        %v1372 = vsel %vm1364, %v1339, %v737
        %v1373 = vsel %vm1364, %v1340, %v739
        %v1374 = vsel %vm1364, %v1341, %v741
        %v1375 = vsel %vm1364, %v1342, %v743
        %v1376 = vsel %vm1364, %v1343, %v745
        %v1377 = vsel %vm1364, %v1344, %v747
        %v1378 = vsel %vm1364, %v1345, %v749
        %v1379 = vsel %vm1364, %v1346, %v751
        %v1380 = vsel %vm1364, %v1347, %v753
        %v1381 = vsel %vm1364, %v1348, %v755
        %v1382 = vsel %vm1364, %v1349, %v757
        %v1383 = vsel %vm1364, %v1350, %v759
        %v1384 = vsel %vm1364, %v1351, %v761
        %v1385 = vsel %vm1364, %v1352, %v763
        %v1386 = vsel %vm1364, %v1353, %v765
        %v1387 = vsel %vm1364, %v1354, %v767
        %v1388 = vsel %vm1364, %v1355, %v769
        %v1389 = vsel %vm1364, %v1356, %v771
        %v1390 = vsel %vm1364, %v1357, %v773
        %v1391 = vsel %vm1364, %v1358, %v775
        %v1392 = vsel %vm1364, %v1359, %v777
        %v1393 = vsel %vm1364, %v1360, %v779
        %v1394 = vsel %vm1364, %v1361, %v781
        %v1395 = vsel %vm1364, %v1362, %v783
        %v1396 = vsel %vm1364, %v1363, %v785
        %vm1397 = vcmask 130048
        %v1398 = vsel %vm1397, %v1365, %v819
        %v1399 = vsel %vm1397, %v1366, %v821
        %v1400 = vsel %vm1397, %v1367, %v823
        %v1401 = vsel %vm1397, %v1368, %v825
        %v1402 = vsel %vm1397, %v1369, %v827
        %v1403 = vsel %vm1397, %v1370, %v829
        %v1404 = vsel %vm1397, %v1371, %v831
        %v1405 = vsel %vm1397, %v1372, %v833
        %v1406 = vsel %vm1397, %v1373, %v835
        %v1407 = vsel %vm1397, %v1374, %v837
        %v1408 = vsel %vm1397, %v1375, %v839
        %v1409 = vsel %vm1397, %v1376, %v841
        %v1410 = vsel %vm1397, %v1377, %v843
        %v1411 = vsel %vm1397, %v1378, %v845
        %v1412 = vsel %vm1397, %v1379, %v847
        %v1413 = vsel %vm1397, %v1380, %v849
        %v1414 = vsel %vm1397, %v1381, %v851
        %v1415 = vsel %vm1397, %v1382, %v853
        %v1416 = vsel %vm1397, %v1383, %v855
        %v1417 = vsel %vm1397, %v1384, %v857
        %v1418 = vsel %vm1397, %v1385, %v859
        %v1419 = vsel %vm1397, %v1386, %v861
        %v1420 = vsel %vm1397, %v1387, %v863
        %v1421 = vsel %vm1397, %v1388, %v865
        %v1422 = vsel %vm1397, %v1389, %v867
        %v1423 = vsel %vm1397, %v1390, %v869
        %v1424 = vsel %vm1397, %v1391, %v871
        %v1425 = vsel %vm1397, %v1392, %v873
        %v1426 = vsel %vm1397, %v1393, %v875
        %v1427 = vsel %vm1397, %v1394, %v877
        %v1428 = vsel %vm1397, %v1395, %v879
        %v1429 = vsel %vm1397, %v1396, %v881
        %vm1430 = vcmask 162816
        %v1431 = vsel %vm1430, %v1398, %v915
        %v1432 = vsel %vm1430, %v1399, %v917
        %v1433 = vsel %vm1430, %v1400, %v919
        %v1434 = vsel %vm1430, %v1401, %v921
        %v1435 = vsel %vm1430, %v1402, %v923
        %v1436 = vsel %vm1430, %v1403, %v925
        %v1437 = vsel %vm1430, %v1404, %v927
        %v1438 = vsel %vm1430, %v1405, %v929
        %v1439 = vsel %vm1430, %v1406, %v931
        %v1440 = vsel %vm1430, %v1407, %v933
        %v1441 = vsel %vm1430, %v1408, %v935
        %v1442 = vsel %vm1430, %v1409, %v937
        %v1443 = vsel %vm1430, %v1410, %v939
        %v1444 = vsel %vm1430, %v1411, %v941
        %v1445 = vsel %vm1430, %v1412, %v943
        %v1446 = vsel %vm1430, %v1413, %v945
        %v1447 = vsel %vm1430, %v1414, %v947
        %v1448 = vsel %vm1430, %v1415, %v949
        %v1449 = vsel %vm1430, %v1416, %v951
        %v1450 = vsel %vm1430, %v1417, %v953
        %v1451 = vsel %vm1430, %v1418, %v955
        %v1452 = vsel %vm1430, %v1419, %v957
        %v1453 = vsel %vm1430, %v1420, %v959
        %v1454 = vsel %vm1430, %v1421, %v961
        %v1455 = vsel %vm1430, %v1422, %v963
        %v1456 = vsel %vm1430, %v1423, %v965
        %v1457 = vsel %vm1430, %v1424, %v967
        %v1458 = vsel %vm1430, %v1425, %v969
        %v1459 = vsel %vm1430, %v1426, %v971
        %v1460 = vsel %vm1430, %v1427, %v973
        %v1461 = vsel %vm1430, %v1428, %v975
        %v1462 = vsel %vm1430, %v1429, %v977
        %vm1463 = vcmask 195584
        %v1464 = vsel %vm1463, %v1431, %v1011
        %v1465 = vsel %vm1463, %v1432, %v1013
        %v1466 = vsel %vm1463, %v1433, %v1015
        %v1467 = vsel %vm1463, %v1434, %v1017
        %v1468 = vsel %vm1463, %v1435, %v1019
        %v1469 = vsel %vm1463, %v1436, %v1021
        %v1470 = vsel %vm1463, %v1437, %v1023
        %v1471 = vsel %vm1463, %v1438, %v1025
        %v1472 = vsel %vm1463, %v1439, %v1027
        %v1473 = vsel %vm1463, %v1440, %v1029
        %v1474 = vsel %vm1463, %v1441, %v1031
        %v1475 = vsel %vm1463, %v1442, %v1033
        %v1476 = vsel %vm1463, %v1443, %v1035
        %v1477 = vsel %vm1463, %v1444, %v1037
        %v1478 = vsel %vm1463, %v1445, %v1039
        %v1479 = vsel %vm1463, %v1446, %v1041
        %v1480 = vsel %vm1463, %v1447, %v1043
        %v1481 = vsel %vm1463, %v1448, %v1045
        %v1482 = vsel %vm1463, %v1449, %v1047
        %v1483 = vsel %vm1463, %v1450, %v1049
        %v1484 = vsel %vm1463, %v1451, %v1051
        %v1485 = vsel %vm1463, %v1452, %v1053
        %v1486 = vsel %vm1463, %v1453, %v1055
        %v1487 = vsel %vm1463, %v1454, %v1057
        %v1488 = vsel %vm1463, %v1455, %v1059
        %v1489 = vsel %vm1463, %v1456, %v1061
        %v1490 = vsel %vm1463, %v1457, %v1063
        %v1491 = vsel %vm1463, %v1458, %v1065
        %v1492 = vsel %vm1463, %v1459, %v1067
        %v1493 = vsel %vm1463, %v1460, %v1069
        %v1494 = vsel %vm1463, %v1461, %v1071
        %v1495 = vsel %vm1463, %v1462, %v1073
        %vm1496 = vcmask 228352
        %v1497 = vsel %vm1496, %v1464, %v1107
        %v1498 = vsel %vm1496, %v1465, %v1109
        %v1499 = vsel %vm1496, %v1466, %v1111
        %v1500 = vsel %vm1496, %v1467, %v1113
        %v1501 = vsel %vm1496, %v1468, %v1115
        %v1502 = vsel %vm1496, %v1469, %v1117
        %v1503 = vsel %vm1496, %v1470, %v1119
        %v1504 = vsel %vm1496, %v1471, %v1121
        %v1505 = vsel %vm1496, %v1472, %v1123
        %v1506 = vsel %vm1496, %v1473, %v1125
        %v1507 = vsel %vm1496, %v1474, %v1127
        %v1508 = vsel %vm1496, %v1475, %v1129
        %v1509 = vsel %vm1496, %v1476, %v1131
        %v1510 = vsel %vm1496, %v1477, %v1133
        %v1511 = vsel %vm1496, %v1478, %v1135
        %v1512 = vsel %vm1496, %v1479, %v1137
        %v1513 = vsel %vm1496, %v1480, %v1139
        %v1514 = vsel %vm1496, %v1481, %v1141
        %v1515 = vsel %vm1496, %v1482, %v1143
        %v1516 = vsel %vm1496, %v1483, %v1145
        %v1517 = vsel %vm1496, %v1484, %v1147
        %v1518 = vsel %vm1496, %v1485, %v1149
        %v1519 = vsel %vm1496, %v1486, %v1151
        %v1520 = vsel %vm1496, %v1487, %v1153
        %v1521 = vsel %vm1496, %v1488, %v1155
        %v1522 = vsel %vm1496, %v1489, %v1157
        %v1523 = vsel %vm1496, %v1490, %v1159
        %v1524 = vsel %vm1496, %v1491, %v1161
        %v1525 = vsel %vm1496, %v1492, %v1163
        %v1526 = vsel %vm1496, %v1493, %v1165
        %v1527 = vsel %vm1496, %v1494, %v1167
        %v1528 = vsel %vm1496, %v1495, %v1169
        %vm1529 = vcmask 261120
        %v1530 = vsel %vm1529, %v1497, %v1203
        %v1531 = vsel %vm1529, %v1498, %v1205
        %v1532 = vsel %vm1529, %v1499, %v1207
        %v1533 = vsel %vm1529, %v1500, %v1209
        %v1534 = vsel %vm1529, %v1501, %v1211
        %v1535 = vsel %vm1529, %v1502, %v1213
        %v1536 = vsel %vm1529, %v1503, %v1215
        %v1537 = vsel %vm1529, %v1504, %v1217
        %v1538 = vsel %vm1529, %v1505, %v1219
        %v1539 = vsel %vm1529, %v1506, %v1221
        %v1540 = vsel %vm1529, %v1507, %v1223
        %v1541 = vsel %vm1529, %v1508, %v1225
        %v1542 = vsel %vm1529, %v1509, %v1227
        %v1543 = vsel %vm1529, %v1510, %v1229
        %v1544 = vsel %vm1529, %v1511, %v1231
        %v1545 = vsel %vm1529, %v1512, %v1233
        %v1546 = vsel %vm1529, %v1513, %v1235
        %v1547 = vsel %vm1529, %v1514, %v1237
        %v1548 = vsel %vm1529, %v1515, %v1239
        %v1549 = vsel %vm1529, %v1516, %v1241
        %v1550 = vsel %vm1529, %v1517, %v1243
        %v1551 = vsel %vm1529, %v1518, %v1245
        %v1552 = vsel %vm1529, %v1519, %v1247
        %v1553 = vsel %vm1529, %v1520, %v1249
        %v1554 = vsel %vm1529, %v1521, %v1251
        %v1555 = vsel %vm1529, %v1522, %v1253
        %v1556 = vsel %vm1529, %v1523, %v1255
        %v1557 = vsel %vm1529, %v1524, %v1257
        %v1558 = vsel %vm1529, %v1525, %v1259
        %v1559 = vsel %vm1529, %v1526, %v1261
        %v1560 = vsel %vm1529, %v1527, %v1263
        %v1561 = vsel %vm1529, %v1528, %v1265
        %v1562 = vpack.c.bf16 %v1531, %v1530
        %v1563 = vpack.c.bf16 %v1533, %v1532
        %v1564 = vpack.c.bf16 %v1535, %v1534
        %v1565 = vpack.c.bf16 %v1537, %v1536
        %v1566 = vpack.c.bf16 %v1539, %v1538
        %v1567 = vpack.c.bf16 %v1541, %v1540
        %v1568 = vpack.c.bf16 %v1543, %v1542
        %v1569 = vpack.c.bf16 %v1545, %v1544
        %v1570 = vpack.c.bf16 %v1547, %v1546
        %v1571 = vpack.c.bf16 %v1549, %v1548
        %v1572 = vpack.c.bf16 %v1551, %v1550
        %v1573 = vpack.c.bf16 %v1553, %v1552
        %v1574 = vpack.c.bf16 %v1555, %v1554
        %v1575 = vpack.c.bf16 %v1557, %v1556
        %v1576 = vpack.c.bf16 %v1559, %v1558
        %v1577 = vpack.c.bf16 %v1561, %v1560
        %v1578 = vld [vmem:[%s1] sm:$0xf]
        %v1579 = vld [vmem:[%s1 + $0x4] sm:$0xf]
        %v1580 = vld [vmem:[%s1 + $0x8] sm:$0xf]
        %v1581 = vld [vmem:[%s1 + $0xc] sm:$0xf]
        %v1582 = vld [vmem:[%s1 + $0x10] sm:$0x3]
        %v1583 = vld [vmem:[%s2] sm:$0x1]
        %v1585 = vlaneseq
        %v1586 = vshrl.u32 %v1585, 7
        %v1587 = vsub.s32 0, %v1586
        %v1588 = vrot.slane %v1583, %v1587
        %v1595 = vunpack.c.l.b16 %v1578
        %v1596 = vunpack.c.l.b16 %v1579
        %v1597 = vunpack.c.l.b16 %v1580
        %v1598 = vunpack.c.l.b16 %v1581
        %v1599 = vunpack.c.l.b16 %v1582
        %v1600 = vpack.c.b16 %v1596, %v1595
        %v1601 = vpack.c.b16 %v1598, %v1597
        %v1602 = vpack.c.b16 %v1599, %v1599
        %vm1605 = vcmask 293888
        %v1607 = vsel %vm1605, %v1562, 0
        %v1610 = vsel %vm1605, %v1563, 0
        %v1613 = vsel %vm1605, %v1564, 0
        %v1616 = vsel %vm1605, %v1565, 0
        %v1619 = vsel %vm1605, %v1566, 0
        %v1622 = vsel %vm1605, %v1567, 0
        %v1625 = vsel %vm1605, %v1568, 0
        %v1628 = vsel %vm1605, %v1569, 0
        %v1631 = vsel %vm1605, %v1570, 0
        %v1634 = vsel %vm1605, %v1571, 0
        %v1637 = vsel %vm1605, %v1572, 0
        %v1640 = vsel %vm1605, %v1573, 0
        %v1643 = vsel %vm1605, %v1574, 0
        %v1646 = vsel %vm1605, %v1575, 0
        %v1649 = vsel %vm1605, %v1576, 0
        %v1652 = vsel %vm1605, %v1577, 0
        %vm1654 = vcmask 1041408
        %v1656 = vsel %vm1654, %v1602, 0
        %1658 = vmatprep.subr.bf16.mxu0 0
        %1659 = vmatpush1.bf16.msra.mxu0 %v1600
        %1660 = vmatprep.subr.bf16.mxu0 0
        %1661 = vmatpush1.bf16.msra.mxu0 %v1601
        %1662 = vmatprep.subr.bf16.mxu0 0
        %1663 = vmatpush1.bf16.msra.mxu0 %v1656
        %1664 = vmatprep.subr.bf16.mxu0 0
        %1665 = vmatpush1.bf16.msra.mxu0 0
        %1666 = vmatprep.subr.bf16.mxu0 0
        %1667 = vmatpush1.bf16.msra.mxu0 0
        %1668 = vmatprep.subr.bf16.mxu0 0
        %1669 = vmatpush1.bf16.msra.mxu0 0
        %1670 = vmatprep.subr.bf16.mxu0 0
        %1671 = vmatpush1.bf16.msra.mxu0 0
        %1672 = vmatprep.subr.bf16.mxu0 0
        %1673 = vmatpush1.bf16.msra.mxu0 0
        %1674 = vmatprep.subr.bf16.mxu0 0
        %1675 = vmatpush1.bf16.msra.mxu0 0
        %1676 = vmatprep.subr.bf16.mxu0 0
        %1677 = vmatpush1.bf16.msra.mxu0 0
        %1678 = vmatprep.subr.bf16.mxu0 0
        %1679 = vmatpush1.bf16.msra.mxu0 0
        %1680 = vmatprep.subr.bf16.mxu0 0
        %1681 = vmatpush1.bf16.msra.mxu0 0
        %1682 = vmatprep.subr.bf16.mxu0 0
        %1683 = vmatpush1.bf16.msra.mxu0 0
        %1684 = vmatprep.subr.bf16.mxu0 0
        %1685 = vmatpush1.bf16.msra.mxu0 0
        %1686 = vmatprep.subr.bf16.mxu0 0
        %1687 = vmatpush1.bf16.msra.mxu0 0
        %1688 = vmatprep.subr.bf16.mxu0 0
        %1689 = vmatpush1.bf16.msra.mxu0 0
        %1690 = vmatprep.mubr.bf16.mxu0 0
        %1691 = vmatmul.mubr.bf16.gmra.mrb[0].mxu0 %v1607
        %v1692 = vpop.f32.mrb[0].mxu0
        %v1693 = vadd.f32 %v1588, %v1692
        %v1694 = vpop.f32.mrb[0].mxu0
        %v1695 = vpop.f32.mrb[0].mxu0
        %v1696 = vadd.f32 %v1588, %v1695
        %v1697 = vpop.f32.mrb[0].mxu0
        %1698 = vmatprep.mubr.bf16.mxu0 0
        %1699 = vmatmul.mubr.bf16.gmra.mrb[0].mxu0 %v1610
        %v1700 = vpop.f32.mrb[0].mxu0
        %v1701 = vadd.f32 %v1588, %v1700
        %v1702 = vpop.f32.mrb[0].mxu0
        %v1703 = vpop.f32.mrb[0].mxu0
        %v1704 = vadd.f32 %v1588, %v1703
        %v1705 = vpop.f32.mrb[0].mxu0
        %1706 = vmatprep.mubr.bf16.mxu0 0
        %1707 = vmatmul.mubr.bf16.gmra.mrb[0].mxu0 %v1613
        %v1708 = vpop.f32.mrb[0].mxu0
        %v1709 = vadd.f32 %v1588, %v1708
        %v1710 = vpop.f32.mrb[0].mxu0
        %v1711 = vpop.f32.mrb[0].mxu0
        %v1712 = vadd.f32 %v1588, %v1711
        %v1713 = vpop.f32.mrb[0].mxu0
        %1714 = vmatprep.mubr.bf16.mxu0 0
        %1715 = vmatmul.mubr.bf16.gmra.mrb[0].mxu0 %v1616
        %v1716 = vpop.f32.mrb[0].mxu0
        %v1717 = vadd.f32 %v1588, %v1716
        %v1718 = vpop.f32.mrb[0].mxu0
        %v1719 = vpop.f32.mrb[0].mxu0
        %v1720 = vadd.f32 %v1588, %v1719
        %v1721 = vpop.f32.mrb[0].mxu0
        %1722 = vmatprep.mubr.bf16.mxu0 0
        %1723 = vmatmul.mubr.bf16.gmra.mrb[0].mxu0 %v1619
        %v1724 = vpop.f32.mrb[0].mxu0
        %v1725 = vadd.f32 %v1588, %v1724
        %v1726 = vpop.f32.mrb[0].mxu0
        %v1727 = vpop.f32.mrb[0].mxu0
        %v1728 = vadd.f32 %v1588, %v1727
        %v1729 = vpop.f32.mrb[0].mxu0
        %1730 = vmatprep.mubr.bf16.mxu0 0
        %1731 = vmatmul.mubr.bf16.gmra.mrb[0].mxu0 %v1622
        %v1732 = vpop.f32.mrb[0].mxu0
        %v1733 = vadd.f32 %v1588, %v1732
        %v1734 = vpop.f32.mrb[0].mxu0
        %v1735 = vpop.f32.mrb[0].mxu0
        %v1736 = vadd.f32 %v1588, %v1735
        %v1737 = vpop.f32.mrb[0].mxu0
        %1738 = vmatprep.mubr.bf16.mxu0 0
        %1739 = vmatmul.mubr.bf16.gmra.mrb[0].mxu0 %v1625
        %v1740 = vpop.f32.mrb[0].mxu0
        %v1741 = vadd.f32 %v1588, %v1740
        %v1742 = vpop.f32.mrb[0].mxu0
        %v1743 = vpop.f32.mrb[0].mxu0
        %v1744 = vadd.f32 %v1588, %v1743
        %v1745 = vpop.f32.mrb[0].mxu0
        %1746 = vmatprep.mubr.bf16.mxu0 0
        %1747 = vmatmul.mubr.bf16.gmra.mrb[0].mxu0 %v1628
        %v1748 = vpop.f32.mrb[0].mxu0
        %v1749 = vadd.f32 %v1588, %v1748
        %v1750 = vpop.f32.mrb[0].mxu0
        %v1751 = vpop.f32.mrb[0].mxu0
        %v1752 = vadd.f32 %v1588, %v1751
        %v1753 = vpop.f32.mrb[0].mxu0
        %1754 = vmatprep.mubr.bf16.mxu0 0
        %1755 = vmatmul.mubr.bf16.gmra.mrb[0].mxu0 %v1631
        %v1756 = vpop.f32.mrb[0].mxu0
        %v1757 = vadd.f32 %v1588, %v1756
        %v1758 = vpop.f32.mrb[0].mxu0
        %v1759 = vpop.f32.mrb[0].mxu0
        %v1760 = vadd.f32 %v1588, %v1759
        %v1761 = vpop.f32.mrb[0].mxu0
        %1762 = vmatprep.mubr.bf16.mxu0 0
        %1763 = vmatmul.mubr.bf16.gmra.mrb[0].mxu0 %v1634
        %v1764 = vpop.f32.mrb[0].mxu0
        %v1765 = vadd.f32 %v1588, %v1764
        %v1766 = vpop.f32.mrb[0].mxu0
        %v1767 = vpop.f32.mrb[0].mxu0
        %v1768 = vadd.f32 %v1588, %v1767
        %v1769 = vpop.f32.mrb[0].mxu0
        %1770 = vmatprep.mubr.bf16.mxu0 0
        %1771 = vmatmul.mubr.bf16.gmra.mrb[0].mxu0 %v1637
        %v1772 = vpop.f32.mrb[0].mxu0
        %v1773 = vadd.f32 %v1588, %v1772
        %v1774 = vpop.f32.mrb[0].mxu0
        %v1775 = vpop.f32.mrb[0].mxu0
        %v1776 = vadd.f32 %v1588, %v1775
        %v1777 = vpop.f32.mrb[0].mxu0
        %1778 = vmatprep.mubr.bf16.mxu0 0
        %1779 = vmatmul.mubr.bf16.gmra.mrb[0].mxu0 %v1640
        %v1780 = vpop.f32.mrb[0].mxu0
        %v1781 = vadd.f32 %v1588, %v1780
        %v1782 = vpop.f32.mrb[0].mxu0
        %v1783 = vpop.f32.mrb[0].mxu0
        %v1784 = vadd.f32 %v1588, %v1783
        %v1785 = vpop.f32.mrb[0].mxu0
        %1786 = vmatprep.mubr.bf16.mxu0 0
        %1787 = vmatmul.mubr.bf16.gmra.mrb[0].mxu0 %v1643
        %v1788 = vpop.f32.mrb[0].mxu0
        %v1789 = vadd.f32 %v1588, %v1788
        %v1790 = vpop.f32.mrb[0].mxu0
        %v1791 = vpop.f32.mrb[0].mxu0
        %v1792 = vadd.f32 %v1588, %v1791
        %v1793 = vpop.f32.mrb[0].mxu0
        %1794 = vmatprep.mubr.bf16.mxu0 0
        %1795 = vmatmul.mubr.bf16.gmra.mrb[0].mxu0 %v1646
        %v1796 = vpop.f32.mrb[0].mxu0
        %v1797 = vadd.f32 %v1588, %v1796
        %v1798 = vpop.f32.mrb[0].mxu0
        %v1799 = vpop.f32.mrb[0].mxu0
        %v1800 = vadd.f32 %v1588, %v1799
        %v1801 = vpop.f32.mrb[0].mxu0
        %1802 = vmatprep.mubr.bf16.mxu0 0
        %1803 = vmatmul.mubr.bf16.gmra.mrb[0].mxu0 %v1649
        %v1804 = vpop.f32.mrb[0].mxu0
        %v1805 = vadd.f32 %v1588, %v1804
        %v1806 = vpop.f32.mrb[0].mxu0
        %v1807 = vpop.f32.mrb[0].mxu0
        %v1808 = vadd.f32 %v1588, %v1807
        %v1809 = vpop.f32.mrb[0].mxu0
        %1810 = vmatprep.mubr.bf16.mxu0 0
        %1811 = vmatmul.mubr.bf16.gmra.mrb[0].mxu0 %v1652
        %v1812 = vpop.f32.mrb[0].mxu0
        %v1813 = vadd.f32 %v1588, %v1812
        %v1814 = vpop.f32.mrb[0].mxu0
        %v1815 = vpop.f32.mrb[0].mxu0
        %v1816 = vadd.f32 %v1588, %v1815
        %v1817 = vpop.f32.mrb[0].mxu0
        %1818 = vdwg.mxu0
        %v1819 = vadd.f32 %v1693, %v1696
        %v1820 = vadd.f32 %v1819, %v1701
        %v1821 = vadd.f32 %v1820, %v1704
        %v1822 = vadd.f32 %v1821, %v1709
        %v1823 = vadd.f32 %v1822, %v1712
        %v1824 = vadd.f32 %v1823, %v1717
        %v1825 = vadd.f32 %v1824, %v1720
        %v1826 = vadd.f32 %v1825, %v1725
        %v1827 = vadd.f32 %v1826, %v1728
        %v1828 = vadd.f32 %v1827, %v1733
        %v1829 = vadd.f32 %v1828, %v1736
        %v1830 = vadd.f32 %v1829, %v1741
        %v1831 = vadd.f32 %v1830, %v1744
        %v1832 = vadd.f32 %v1831, %v1749
        %v1833 = vadd.f32 %v1832, %v1752
        %v1834 = vadd.f32 %v1833, %v1757
        %v1835 = vadd.f32 %v1834, %v1760
        %v1836 = vadd.f32 %v1835, %v1765
        %v1837 = vadd.f32 %v1836, %v1768
        %v1838 = vadd.f32 %v1837, %v1773
        %v1839 = vadd.f32 %v1838, %v1776
        %v1840 = vadd.f32 %v1839, %v1781
        %v1841 = vadd.f32 %v1840, %v1784
        %v1842 = vadd.f32 %v1841, %v1789
        %v1843 = vadd.f32 %v1842, %v1792
        %v1844 = vadd.f32 %v1843, %v1797
        %v1845 = vadd.f32 %v1844, %v1800
        %v1846 = vadd.f32 %v1845, %v1805
        %v1847 = vadd.f32 %v1846, %v1808
        %v1848 = vadd.f32 %v1847, %v1813
        %v1849 = vadd.f32 %v1848, %v1816
        %v1850 = vrot.slane %v1849, 4
        %v1851 = vadd.f32 %v1849, %v1850
        %v1852 = vrot.slane %v1851, 2
        %v1853 = vadd.f32 %v1851, %v1852
        %v1854 = vrot.slane %v1853, 1
        %v1855 = vadd.f32 %v1853, %v1854
        %1856 = vst [vmem:[%s227] sm:$0x1] %v1855
        %v1857 = vmul.f32 %v1693, %v1693
        %v1858 = vmul.f32 %v1696, %v1696
        %v1859 = vmul.f32 %v1701, %v1701
        %v1860 = vmul.f32 %v1704, %v1704
        %v1861 = vmul.f32 %v1709, %v1709
        %v1862 = vmul.f32 %v1712, %v1712
        %v1863 = vmul.f32 %v1717, %v1717
        %v1864 = vmul.f32 %v1720, %v1720
        %v1865 = vmul.f32 %v1725, %v1725
        %v1866 = vmul.f32 %v1728, %v1728
        %v1867 = vmul.f32 %v1733, %v1733
        %v1868 = vmul.f32 %v1736, %v1736
        %v1869 = vmul.f32 %v1741, %v1741
        %v1870 = vmul.f32 %v1744, %v1744
        %v1871 = vmul.f32 %v1749, %v1749
        %v1872 = vmul.f32 %v1752, %v1752
        %v1873 = vmul.f32 %v1757, %v1757
        %v1874 = vmul.f32 %v1760, %v1760
        %v1875 = vmul.f32 %v1765, %v1765
        %v1876 = vmul.f32 %v1768, %v1768
        %v1877 = vmul.f32 %v1773, %v1773
        %v1878 = vmul.f32 %v1776, %v1776
        %v1879 = vmul.f32 %v1781, %v1781
        %v1880 = vmul.f32 %v1784, %v1784
        %v1881 = vmul.f32 %v1789, %v1789
        %v1882 = vmul.f32 %v1792, %v1792
        %v1883 = vmul.f32 %v1797, %v1797
        %v1884 = vmul.f32 %v1800, %v1800
        %v1885 = vmul.f32 %v1805, %v1805
        %v1886 = vmul.f32 %v1808, %v1808
        %v1887 = vmul.f32 %v1813, %v1813
        %v1888 = vmul.f32 %v1816, %v1816
        %v1889 = vadd.f32 %v1857, %v1858
        %v1890 = vadd.f32 %v1889, %v1859
        %v1891 = vadd.f32 %v1890, %v1860
        %v1892 = vadd.f32 %v1891, %v1861
        %v1893 = vadd.f32 %v1892, %v1862
        %v1894 = vadd.f32 %v1893, %v1863
        %v1895 = vadd.f32 %v1894, %v1864
        %v1896 = vadd.f32 %v1895, %v1865
        %v1897 = vadd.f32 %v1896, %v1866
        %v1898 = vadd.f32 %v1897, %v1867
        %v1899 = vadd.f32 %v1898, %v1868
        %v1900 = vadd.f32 %v1899, %v1869
        %v1901 = vadd.f32 %v1900, %v1870
        %v1902 = vadd.f32 %v1901, %v1871
        %v1903 = vadd.f32 %v1902, %v1872
        %v1904 = vadd.f32 %v1903, %v1873
        %v1905 = vadd.f32 %v1904, %v1874
        %v1906 = vadd.f32 %v1905, %v1875
        %v1907 = vadd.f32 %v1906, %v1876
        %v1908 = vadd.f32 %v1907, %v1877
        %v1909 = vadd.f32 %v1908, %v1878
        %v1910 = vadd.f32 %v1909, %v1879
        %v1911 = vadd.f32 %v1910, %v1880
        %v1912 = vadd.f32 %v1911, %v1881
        %v1913 = vadd.f32 %v1912, %v1882
        %v1914 = vadd.f32 %v1913, %v1883
        %v1915 = vadd.f32 %v1914, %v1884
        %v1916 = vadd.f32 %v1915, %v1885
        %v1917 = vadd.f32 %v1916, %v1886
        %v1918 = vadd.f32 %v1917, %v1887
        %v1919 = vadd.f32 %v1918, %v1888
        %v1920 = vrot.slane %v1919, 4
        %v1921 = vadd.f32 %v1919, %v1920
        %v1922 = vrot.slane %v1921, 2
        %v1923 = vadd.f32 %v1921, %v1922
        %v1924 = vrot.slane %v1923, 1
        %v1925 = vadd.f32 %v1923, %v1924
        %1926 = vst [vmem:[%s233] sm:$0x1] %v1925
        %v1927 = vpack.c.bf16 %v1696, %v1693
        %v1928 = vpack.c.bf16 %v1704, %v1701
        %v1929 = vpack.c.bf16 %v1712, %v1709
        %v1930 = vpack.c.bf16 %v1720, %v1717
        %v1931 = vpack.c.bf16 %v1728, %v1725
        %v1932 = vpack.c.bf16 %v1736, %v1733
        %v1933 = vpack.c.bf16 %v1744, %v1741
        %v1934 = vpack.c.bf16 %v1752, %v1749
        %v1935 = vpack.c.bf16 %v1760, %v1757
        %v1936 = vpack.c.bf16 %v1768, %v1765
        %v1937 = vpack.c.bf16 %v1776, %v1773
        %v1938 = vpack.c.bf16 %v1784, %v1781
        %v1939 = vpack.c.bf16 %v1792, %v1789
        %v1940 = vpack.c.bf16 %v1800, %v1797
        %v1941 = vpack.c.bf16 %v1808, %v1805
        %v1942 = vpack.c.bf16 %v1816, %v1813
        %v1959 = vunpack.c.l.b16 %v1927
        %v1960 = vunpack.c.h.b16 %v1927
        %v1961 = vunpack.c.l.b16 %v1928
        %v1962 = vunpack.c.h.b16 %v1928
        %v1963 = vunpack.c.l.b16 %v1929
        %v1964 = vunpack.c.h.b16 %v1929
        %v1965 = vunpack.c.l.b16 %v1930
        %v1966 = vunpack.c.h.b16 %v1930
        %v1967 = vunpack.c.l.b16 %v1931
        %v1968 = vunpack.c.h.b16 %v1931
        %v1969 = vunpack.c.l.b16 %v1932
        %v1970 = vunpack.c.h.b16 %v1932
        %v1971 = vunpack.c.l.b16 %v1933
        %v1972 = vunpack.c.h.b16 %v1933
        %v1973 = vunpack.c.l.b16 %v1934
        %v1974 = vunpack.c.h.b16 %v1934
        %v1975 = vunpack.c.l.b16 %v1935
        %v1976 = vunpack.c.h.b16 %v1935
        %v1977 = vunpack.c.l.b16 %v1936
        %v1978 = vunpack.c.h.b16 %v1936
        %v1979 = vunpack.c.l.b16 %v1937
        %v1980 = vunpack.c.h.b16 %v1937
        %v1981 = vunpack.c.l.b16 %v1938
        %v1982 = vunpack.c.h.b16 %v1938
        %v1983 = vunpack.c.l.b16 %v1939
        %v1984 = vunpack.c.h.b16 %v1939
        %v1985 = vunpack.c.l.b16 %v1940
        %v1986 = vunpack.c.h.b16 %v1940
        %v1987 = vunpack.c.l.b16 %v1941
        %v1988 = vunpack.c.h.b16 %v1941
        %v1989 = vunpack.c.l.b16 %v1942
        %v1990 = vunpack.c.h.b16 %v1942
        %v1991 = vpack.c.b16 %v1959, %v1959
        %v1992 = vpack.c.b16 %v1960, %v1960
        %v1993 = vpack.c.b16 %v1961, %v1961
        %v1994 = vpack.c.b16 %v1962, %v1962
        %v1995 = vpack.c.b16 %v1963, %v1963
        %v1996 = vpack.c.b16 %v1964, %v1964
        %v1997 = vpack.c.b16 %v1965, %v1965
        %v1998 = vpack.c.b16 %v1966, %v1966
        %v1999 = vpack.c.b16 %v1967, %v1967
        %v2000 = vpack.c.b16 %v1968, %v1968
        %v2001 = vpack.c.b16 %v1969, %v1969
        %v2002 = vpack.c.b16 %v1970, %v1970
        %v2003 = vpack.c.b16 %v1971, %v1971
        %v2004 = vpack.c.b16 %v1972, %v1972
        %v2005 = vpack.c.b16 %v1973, %v1973
        %v2006 = vpack.c.b16 %v1974, %v1974
        %v2007 = vpack.c.b16 %v1975, %v1975
        %v2008 = vpack.c.b16 %v1976, %v1976
        %v2009 = vpack.c.b16 %v1977, %v1977
        %v2010 = vpack.c.b16 %v1978, %v1978
        %v2011 = vpack.c.b16 %v1979, %v1979
        %v2012 = vpack.c.b16 %v1980, %v1980
        %v2013 = vpack.c.b16 %v1981, %v1981
        %v2014 = vpack.c.b16 %v1982, %v1982
        %v2015 = vpack.c.b16 %v1983, %v1983
        %v2016 = vpack.c.b16 %v1984, %v1984
        %v2017 = vpack.c.b16 %v1985, %v1985
        %v2018 = vpack.c.b16 %v1986, %v1986
        %v2019 = vpack.c.b16 %v1987, %v1987
        %v2020 = vpack.c.b16 %v1988, %v1988
        %v2021 = vpack.c.b16 %v1989, %v1989
        %v2022 = vpack.c.b16 %v1990, %v1990
        %2055 = vst [vmem:[%s221] sm:$0xf] %v1991
        %2056 = vst [vmem:[%s221 + $0x4] sm:$0xf] %v1992
        %2057 = vst [vmem:[%s221 + $0x8] sm:$0xf] %v1993
        %2058 = vst [vmem:[%s221 + $0xc] sm:$0xf] %v1994
        %2059 = vst [vmem:[%s221 + $0x10] sm:$0xf] %v1995
        %2060 = vst [vmem:[%s221 + $0x14] sm:$0xf] %v1996
        %2061 = vst [vmem:[%s221 + $0x18] sm:$0xf] %v1997
        %2062 = vst [vmem:[%s221 + $0x1c] sm:$0xf] %v1998
        %2063 = vst [vmem:[%s221 + $0x20] sm:$0xf] %v1999
        %2064 = vst [vmem:[%s221 + $0x24] sm:$0xf] %v2000
        %2065 = vst [vmem:[%s221 + $0x28] sm:$0xf] %v2001
        %2066 = vst [vmem:[%s221 + $0x2c] sm:$0xf] %v2002
        %2067 = vst [vmem:[%s221 + $0x30] sm:$0xf] %v2003
        %2068 = vst [vmem:[%s221 + $0x34] sm:$0xf] %v2004
        %2069 = vst [vmem:[%s221 + $0x38] sm:$0xf] %v2005
        %2070 = vst [vmem:[%s221 + $0x3c] sm:$0xf] %v2006
        %2071 = vst [vmem:[%s221 + $0x40] sm:$0xf] %v2007
        %2072 = vst [vmem:[%s221 + $0x44] sm:$0xf] %v2008
        %2073 = vst [vmem:[%s221 + $0x48] sm:$0xf] %v2009
        %2074 = vst [vmem:[%s221 + $0x4c] sm:$0xf] %v2010
        %2075 = vst [vmem:[%s221 + $0x50] sm:$0xf] %v2011
        %2076 = vst [vmem:[%s221 + $0x54] sm:$0xf] %v2012
        %2077 = vst [vmem:[%s221 + $0x58] sm:$0xf] %v2013
        %2078 = vst [vmem:[%s221 + $0x5c] sm:$0xf] %v2014
        %2079 = vst [vmem:[%s221 + $0x60] sm:$0xf] %v2015
        %2080 = vst [vmem:[%s221 + $0x64] sm:$0xf] %v2016
        %2081 = vst [vmem:[%s221 + $0x68] sm:$0xf] %v2017
        %2082 = vst [vmem:[%s221 + $0x6c] sm:$0xf] %v2018
        %2083 = vst [vmem:[%s221 + $0x70] sm:$0xf] %v2019
        %2084 = vst [vmem:[%s221 + $0x74] sm:$0xf] %v2020
        %2085 = vst [vmem:[%s221 + $0x78] sm:$0xf] %v2021
        %2086 = vst [vmem:[%s221 + $0x7c] sm:$0xf] %v2022
        %s2087 = sand.u32 %s99, 1
        %s2088 = scalar_lea.sflag [#allocation3], %s2087
        %s2089 = sand.u32 %s99, 1
        %s2090 = smul.addr %s2089, 128
        %s2091 = scalar_lea.vmem [#allocation2], %s2090
        %s2092 = sand.u32 %s23, 1
        %s2093 = scalar_lea.sflag [#allocation5], %s2092
        %s2094 = sand.u32 %s125, 1
        %s2095 = scalar_lea.vmem [#allocation4], %s2094
        %s2096 = sand.u32 %s23, 1
        %s2097 = scalar_lea.sflag [#allocation5], %s2096
        %s2098 = sand.u32 %s151, 1
        %s2099 = scalar_lea.vmem [#allocation6], %s2098
        // Predicated region
        $region33: #{tpu_custom_call.1} parent=31 // pred_check
          %p2100 = pneg %p109
        $region34: #{tpu_custom_call.1} parent=31 // pred_check_branch
          %2102 = sbr.rel (%p2100) target = $region36
        $region35: #{tpu_custom_call.1} parent=31 // pred_region
          %s2104 = ssub.s32 2048, 2048
          %2105 = vsyncadd %s2088, %s2104
          %s2106 = smul.addr %s23, 32
          %s2107 = smul.addr %s2106, 64
          %s2108 = scalar_lea.hbm %s3, %s2107
          %s2109 = sshll.u32 %s2091, 4
          %s2110 = int_to_ptr.vmem [resolvable:$true] %s2109
          %2115 = dma.vmem_to_hbm [thread:$0]  %s2110, 2048, %s2108, %s2088, 64, 64, 4
        $region36: #{tpu_custom_call.1} parent=31 // pred_fallthru
          _
        // Predicated region
        $region37: #{tpu_custom_call.1} parent=31 // pred_check
          %p2116 = pneg %p135
        $region38: #{tpu_custom_call.1} parent=31 // pred_check_branch
          %2118 = sbr.rel (%p2116) target = $region40
        $region39: #{tpu_custom_call.1} parent=31 // pred_region
          %s2120 = ssub.s32 16, 16
          %2121 = vsyncadd %s2093, %s2120
          %s2122 = smul.addr %s23, 16
          %s2123 = scalar_lea.hbm %s4, %s2122
          %s2125 = sshll.u32 %s2095, 4
          %s2126 = int_to_ptr.vmem [resolvable:$true] %s2125
          %2128 = dma.vmem_to_hbm [thread:$0]  %s2126, 16, %s2123, %s2093
        $region40: #{tpu_custom_call.1} parent=31 // pred_fallthru
          _
        // Predicated region
        $region41: #{tpu_custom_call.1} parent=31 // pred_check
          %p2129 = pneg %p161
        $region42: #{tpu_custom_call.1} parent=31 // pred_check_branch
          %2131 = sbr.rel (%p2129) target = $region44
        $region43: #{tpu_custom_call.1} parent=31 // pred_region
          %s2133 = ssub.s32 16, 16
          %2134 = vsyncadd %s2097, %s2133
          %s2135 = smul.addr %s23, 16
          %s2136 = scalar_lea.hbm %s5, %s2135
          %s2138 = sshll.u32 %s2099, 4
          %s2139 = int_to_ptr.vmem [resolvable:$true] %s2138
          %2141 = dma.vmem_to_hbm [thread:$0]  %s2139, 16, %s2136, %s2097
        $region44: #{tpu_custom_call.1} parent=31 // pred_fallthru
          _
      $region32: #{tpu_custom_call.1} parent=5 // pred_fallthru
        _
      %p2142 = scmp.le.s32.totalorder 2, %s18
      // Predicated region
      $region45: #{tpu_custom_call.1} parent=5 // pred_check
        %p2143 = pneg %p2142
      $region46: #{tpu_custom_call.1} parent=5 // pred_check_branch
        %2145 = sbr.rel (%p2143) target = $region48
      $region47: #{tpu_custom_call.1} parent=5 // pred_region
        %s2146 = ssub.s32 %s18, 2
        // Predicated region
        $region49: #{tpu_custom_call.1} parent=47 // pred_check
          %p2147 = pneg %p115
        $region50: #{tpu_custom_call.1} parent=47 // pred_check_branch
          %2149 = sbr.rel (%p2147) target = $region52
        $region51: #{tpu_custom_call.1} parent=47 // pred_region
          %s2150 = sand.u32 %s100, 1
          %s2151 = scalar_lea.sflag [#allocation3], %s2150
          %s2152 = sand.u32 %s100, 1
          %s2153 = smul.addr %s2152, 128
          %s2154 = scalar_lea.vmem [#allocation2], %s2153
          %2155 = dma.done %s2151, 2048
        $region52: #{tpu_custom_call.1} parent=47 // pred_fallthru
          _
        // Predicated region
        $region53: #{tpu_custom_call.1} parent=47 // pred_check
          %p2156 = pneg %p141
        $region54: #{tpu_custom_call.1} parent=47 // pred_check_branch
          %2158 = sbr.rel (%p2156) target = $region56
        $region55: #{tpu_custom_call.1} parent=47 // pred_region
          %s2159 = sand.u32 %s24, 1
          %s2160 = scalar_lea.sflag [#allocation5], %s2159
          %s2161 = sand.u32 %s126, 1
          %s2162 = scalar_lea.vmem [#allocation4], %s2161
          %2163 = dma.done %s2160, 16
        $region56: #{tpu_custom_call.1} parent=47 // pred_fallthru
          _
        // Predicated region
        $region57: #{tpu_custom_call.1} parent=47 // pred_check
          %p2164 = pneg %p167
        $region58: #{tpu_custom_call.1} parent=47 // pred_check_branch
          %2166 = sbr.rel (%p2164) target = $region60
        $region59: #{tpu_custom_call.1} parent=47 // pred_region
          %s2167 = sand.u32 %s24, 1
          %s2168 = scalar_lea.sflag [#allocation5], %s2167
          %s2169 = sand.u32 %s152, 1
          %s2170 = scalar_lea.vmem [#allocation6], %s2169
          %2171 = dma.done %s2168, 16
        $region60: #{tpu_custom_call.1} parent=47 // pred_fallthru
          _
      $region48: #{tpu_custom_call.1} parent=5 // pred_fallthru
        _
    $region6: #{tpu_custom_call.1} parent=1 // loop_footer
      %s22 = sadd.s32 1, %s18
    $region7: #{tpu_custom_call.1} parent=1 // loop_footer_branch
      %17 = sbr.rel target = $region3
    $region8: #{tpu_custom_call.1} parent=1 // loop_exit
      _
    %2172 = vsyncpa [#allocation3], 1
    %s2173 = scalar_lea.sflag [#allocation3], 1
    %2174 = vsyncpa %s2173, 1
    %2175 = vsyncpa [#allocation5], 1
    %s2176 = scalar_lea.sflag [#allocation5], 1
    %2177 = vsyncpa %s2176, 1

</llo_original>
